<compile_context>
chip_gen: v7x
topology: tpu7x:2x2x1
jax: 0.10.0
libtpu: 0.0.40
codegen_flags: <defaults>
</compile_context>

<pallas_src>
import functools

import jax
import jax.numpy as jnp
from jax.experimental import pallas as pl
from jax.experimental.pallas import tpu as pltpu

FC1_DIMS = 1024
FC2_DIMS = 512
OUT_PAD = 128          # lane-dense padded output width (>= action_space, >= 1)


def _round_up(x, m):
    return ((x + m - 1) // m) * m


# -----------------------------------------------------------------------------
# Kernel: fused fc1 -> relu -> fc2 -> relu -> fc3 [-> masked softmax]
# -----------------------------------------------------------------------------
def _mlp_kernel(x_ref, l1_ref, l2_ref, l3_ref, out_ref, *,
                in_rows, out_dim, is_actor):
    """Weights arrive as bf16 slabs (W rows then one bias row); the MXU runs
    bf16 x bf16 -> f32 and activations stay in f32 between layers."""
    x = x_ref[...].astype(jnp.bfloat16)                         # (TB, in_rows)

    w1 = l1_ref[0:in_rows, :]                                   # (in_rows, 1024)
    b1 = l1_ref[in_rows:in_rows + 1, :].astype(jnp.float32)     # (1, 1024)
    h1 = jnp.dot(x, w1, preferred_element_type=jnp.float32) + b1
    h1 = jnp.maximum(h1, 0.0).astype(jnp.bfloat16)

    w2 = l2_ref[0:FC1_DIMS, :]                                  # (1024, 512)
    b2 = l2_ref[FC1_DIMS:FC1_DIMS + 1, :].astype(jnp.float32)
    h2 = jnp.dot(h1, w2, preferred_element_type=jnp.float32) + b2
    h2 = jnp.maximum(h2, 0.0).astype(jnp.bfloat16)

    w3 = l3_ref[0:FC2_DIMS, :]                                  # (512, OUT_PAD)
    b3 = l3_ref[FC2_DIMS:FC2_DIMS + 1, :].astype(jnp.float32)
    logits = jnp.dot(h2, w3, preferred_element_type=jnp.float32) + b3

    if is_actor:
        # Mask the padded lanes, then numerically-stable softmax; the divide
        # goes to the EUP via the approximate reciprocal (free VLIW slot).
        col = jax.lax.broadcasted_iota(jnp.int32, logits.shape, 1)
        logits = jnp.where(col < out_dim, logits, -1e30)
        m = jnp.max(logits, axis=-1, keepdims=True)
        e = jnp.exp(logits - m)
        denom = jnp.sum(e, axis=-1, keepdims=True)
        out_ref[...] = e * pl.reciprocal(denom, approx=True)
    else:
        out_ref[...] = logits


# -----------------------------------------------------------------------------
# Parameters (PyTorch-shaped f32) and bf16 slab packing
# -----------------------------------------------------------------------------
def init_network_params(key, input_shape, action_space, is_actor):
    """Deterministic synthetic parameters with the module's shapes (f32)."""
    out_dim = action_space if is_actor else 1
    k1, k2, k3, k4, k5, k6 = jax.random.split(key, 6)

    def lin(kw, kb, fan_in, fan_out):
        # PyTorch default nn.Linear init: U(-1/sqrt(fan_in), 1/sqrt(fan_in)).
        bound = 1.0 / float(fan_in) ** 0.5
        w = jax.random.uniform(kw, (fan_in, fan_out), jnp.float32, -bound, bound)
        b = jax.random.uniform(kb, (fan_out,), jnp.float32, -bound, bound)
        return w, b

    w1, b1 = lin(k1, k2, input_shape, FC1_DIMS)
    w2, b2 = lin(k3, k4, FC1_DIMS, FC2_DIMS)
    w3, b3 = lin(k5, k6, FC2_DIMS, out_dim)
    return dict(w1=w1, b1=b1, w2=w2, b2=b2, w3=w3, b3=b3)


def _pack_layer(w, b):
    """Pack (fan_in, fan_out) W and (fan_out,) b into one bf16 slab.

    Rows [0, rows_w) hold W (zero-padded to a multiple of 16 rows so the bias
    row starts on a bf16 sublane-tile boundary); row rows_w holds b.
    """
    fan_in, fan_out = w.shape
    rows_w = _round_up(fan_in, 16)
    slab = jnp.zeros((rows_w + 8, fan_out), jnp.float32)
    slab = slab.at[:fan_in, :].set(w)
    slab = slab.at[rows_w, :].set(b)
    return slab.astype(jnp.bfloat16), rows_w


def pack_network_params(params):
    """Quantize to bf16 and pack each layer's (W, b) into a single slab.

    Halves the dominant weight DMA traffic and collapses 6 weight/bias DMAs
    into 3. fc3 is padded to OUT_PAD lanes so the output store is lane-dense.
    """
    out_dim = params["w3"].shape[1]
    w3p = jnp.zeros((FC2_DIMS, OUT_PAD), jnp.float32).at[:, :out_dim].set(params["w3"])
    b3p = jnp.zeros((OUT_PAD,), jnp.float32).at[:out_dim].set(params["b3"])
    l1, in_rows = _pack_layer(params["w1"], params["b1"])
    l2, _ = _pack_layer(params["w2"], params["b2"])
    l3, _ = _pack_layer(w3p, b3p)
    return dict(l1=l1, l2=l2, l3=l3, in_rows=in_rows, out_dim=out_dim)


# -----------------------------------------------------------------------------
# Forward pass
# -----------------------------------------------------------------------------
def network_forward(packed, x, *, is_actor):
    """Pallas-backed forward pass of Network.

    Actor:  returns softmax probabilities (the Categorical's probs).
    Critic: returns the value estimate (batch, 1).
    """
    # TODO(synk): torch.distributions.Categorical has no Pallas equivalent; we
    # return its probability vector (the distribution's parameters).
    batch, in_dim = x.shape
    in_rows = packed["in_rows"]
    out_dim = packed["out_dim"]

    # Batch tiling: pad batch to a sublane multiple and split into >=2 tiles
    # when possible so the grid axis is a real "parallel" axis (uses both
    # TensorCores on v7x). The weight slabs use a constant block index, so
    # Pallas DMAs them once and keeps them resident in VMEM across all batch
    # tiles (no K-tiling needed: total resident footprint is ~1.1 MiB bf16).
    batch8 = _round_up(max(batch, 8), 8)
    tb = min(128, _round_up(batch8 // 2, 8)) if batch8 >= 16 else 8
    batch_pad = _round_up(batch8, tb)
    grid_b = batch_pad // tb

    xp = jnp.zeros((batch_pad, in_rows), jnp.float32).at[:batch, :in_dim].set(x)

    kernel = functools.partial(_mlp_kernel, in_rows=in_rows, out_dim=out_dim,
                               is_actor=is_actor)

    out = pl.pallas_call(
        kernel,
        out_shape=jax.ShapeDtypeStruct((batch_pad, OUT_PAD), jnp.float32),
        grid=(grid_b,),
        in_specs=[
            pl.BlockSpec((tb, in_rows), lambda i: (i, 0)),
            pl.BlockSpec(packed["l1"].shape, lambda i: (0, 0)),
            pl.BlockSpec(packed["l2"].shape, lambda i: (0, 0)),
            pl.BlockSpec(packed["l3"].shape, lambda i: (0, 0)),
        ],
        out_specs=pl.BlockSpec((tb, OUT_PAD), lambda i: (i, 0)),
        compiler_params=pltpu.CompilerParams(
            dimension_semantics=("parallel",)),
    )(xp, packed["l1"], packed["l2"], packed["l3"])

    return out[:batch, :out_dim]


def _reference_forward(params, x, *, is_actor):
    """Pure-JAX reference emulating the kernel's bf16 weight/activation path."""
    def bf(a):
        return a.astype(jnp.bfloat16).astype(jnp.float32)
    h1 = jnp.maximum(bf(x) @ bf(params["w1"]) + bf(params["b1"]), 0.0)
    h2 = jnp.maximum(bf(h1) @ bf(params["w2"]) + bf(params["b2"]), 0.0)
    logits = bf(h2) @ bf(params["w3"]) + bf(params["b3"])
    return jax.nn.softmax(logits, axis=-1) if is_actor else logits


if __name__ == "__main__":
    key = jax.random.PRNGKey(0)
    k_x, k_actor, k_critic = jax.random.split(key, 3)

    BATCH = 128          # amortizes the ~1 MiB of bf16 weights over many rows
    INPUT_SHAPE = 8      # flat observation vector
    ACTION_SPACE = 4

    x = jax.random.normal(k_x, (BATCH, INPUT_SHAPE), jnp.float32)

    actor_params = init_network_params(k_actor, INPUT_SHAPE, ACTION_SPACE,
                                       is_actor=True)
    critic_params = init_network_params(k_critic, INPUT_SHAPE, ACTION_SPACE,
                                        is_actor=False)
    actor_packed = pack_network_params(actor_params)
    critic_packed = pack_network_params(critic_params)

    probs = jax.block_until_ready(
        network_forward(actor_packed, x, is_actor=True))
    value = jax.block_until_ready(
        network_forward(critic_packed, x, is_actor=False))

    # Correctness checks against a pure-JAX reference (bf16 weights -> looser
    # tolerances than the original f32 test).
    probs_ref = _reference_forward(actor_params, x, is_actor=True)
    value_ref = _reference_forward(critic_params, x, is_actor=False)
    assert probs.shape == (BATCH, ACTION_SPACE)
    assert value.shape == (BATCH, 1)
    assert jnp.allclose(probs, probs_ref, atol=1e-2, rtol=1e-2)
    assert jnp.allclose(value, value_ref, atol=2e-2, rtol=2e-2)
    assert jnp.allclose(jnp.sum(probs, axis=-1), 1.0, atol=1e-2)

    # Also exercise an odd, tiny batch (padding path, grid=(1,)).
    x_small = x[:3]
    probs_small = jax.block_until_ready(
        network_forward(actor_packed, x_small, is_actor=True))
    assert probs_small.shape == (3, ACTION_SPACE)
    assert jnp.allclose(probs_small, probs_ref[:3], atol=1e-2, rtol=1e-2)

    print("KERNEL_OK")
</pallas_src>

<mosaic_0001>
module attributes {stable_mosaic.version = 11 : i64} {
  func.func @_mlp_kernel(%arg0: i32, %arg1: memref<64x16xf32, #tpu.memory_space<vmem>>, %arg2: memref<24x1024xbf16, #tpu.memory_space<vmem>>, %arg3: memref<1032x512xbf16, #tpu.memory_space<vmem>>, %arg4: memref<520x128xbf16, #tpu.memory_space<vmem>>, %arg5: memref<64x128xf32, #tpu.memory_space<vmem>>) attributes {dimension_semantics = [#tpu.dimension_semantics<parallel>], iteration_bounds = array<i64: 2>, scalar_prefetch = 0 : i64, scratch_operands = 0 : i64, tpu.core_type = #tpu.core_type<tc>, window_params = [{transform_indices = @transform_0, window_bounds = array<i64: 64, 16>}, {pipeline_mode = #tpu.pipeline_mode<synchronous>, transform_indices = @transform_1, window_bounds = array<i64: 24, 1024>}, {pipeline_mode = #tpu.pipeline_mode<synchronous>, transform_indices = @transform_2, window_bounds = array<i64: 1032, 512>}, {pipeline_mode = #tpu.pipeline_mode<synchronous>, transform_indices = @transform_3, window_bounds = array<i64: 520, 128>}, {transform_indices = @transform_4, window_bounds = array<i64: 64, 128>}]} {
    %c0 = arith.constant 0 : index
    %c0_0 = arith.constant 0 : index
    %0 = vector.load %arg1[%c0, %c0_0] : memref<64x16xf32, #tpu.memory_space<vmem>>, vector<64x16xf32>
    %1 = arith.truncf %0 : vector<64x16xf32> to vector<64x16xbf16>
    %c0_1 = arith.constant 0 : index
    %c0_2 = arith.constant 0 : index
    %2 = vector.load %arg2[%c0_1, %c0_2] : memref<24x1024xbf16, #tpu.memory_space<vmem>>, vector<16x1024xbf16>
    %c16 = arith.constant 16 : index
    %c0_3 = arith.constant 0 : index
    %3 = vector.load %arg2[%c16, %c0_3] : memref<24x1024xbf16, #tpu.memory_space<vmem>>, vector<1x1024xbf16>
    %4 = arith.extf %3 : vector<1x1024xbf16> to vector<1x1024xf32>
    %cst = arith.constant dense<0.000000e+00> : vector<64x1024xf32>
    %5 = tpu.matmul %1, %2, %cst {dimension_numbers = #tpu.dot_dimension_numbers<[1], [0], [0], [1], [0, 0, 1, 1], [], []>} : vector<64x16xbf16>, vector<16x1024xbf16>, vector<64x1024xf32> -> vector<64x1024xf32>
    %6 = vector.broadcast %4 : vector<1x1024xf32> to vector<64x1024xf32>
    %7 = arith.addf %5, %6 : vector<64x1024xf32>
    %cst_4 = arith.constant 0.000000e+00 : f32
    %8 = vector.broadcast %cst_4 : f32 to vector<64x1024xf32>
    %9 = arith.maximumf %7, %8 : vector<64x1024xf32>
    %10 = arith.truncf %9 : vector<64x1024xf32> to vector<64x1024xbf16>
    %c0_5 = arith.constant 0 : index
    %c0_6 = arith.constant 0 : index
    %11 = vector.load %arg3[%c0_5, %c0_6] : memref<1032x512xbf16, #tpu.memory_space<vmem>>, vector<1024x512xbf16>
    %c1024 = arith.constant 1024 : index
    %c0_7 = arith.constant 0 : index
    %12 = vector.load %arg3[%c1024, %c0_7] : memref<1032x512xbf16, #tpu.memory_space<vmem>>, vector<1x512xbf16>
    %13 = arith.extf %12 : vector<1x512xbf16> to vector<1x512xf32>
    %cst_8 = arith.constant dense<0.000000e+00> : vector<64x512xf32>
    %14 = tpu.matmul %10, %11, %cst_8 {dimension_numbers = #tpu.dot_dimension_numbers<[1], [0], [0], [1], [0, 0, 1, 1], [], []>} : vector<64x1024xbf16>, vector<1024x512xbf16>, vector<64x512xf32> -> vector<64x512xf32>
    %15 = vector.broadcast %13 : vector<1x512xf32> to vector<64x512xf32>
    %16 = arith.addf %14, %15 : vector<64x512xf32>
    %cst_9 = arith.constant 0.000000e+00 : f32
    %17 = vector.broadcast %cst_9 : f32 to vector<64x512xf32>
    %18 = arith.maximumf %16, %17 : vector<64x512xf32>
    %19 = arith.truncf %18 : vector<64x512xf32> to vector<64x512xbf16>
    %c0_10 = arith.constant 0 : index
    %c0_11 = arith.constant 0 : index
    %20 = vector.load %arg4[%c0_10, %c0_11] : memref<520x128xbf16, #tpu.memory_space<vmem>>, vector<512x128xbf16>
    %c512 = arith.constant 512 : index
    %c0_12 = arith.constant 0 : index
    %21 = vector.load %arg4[%c512, %c0_12] : memref<520x128xbf16, #tpu.memory_space<vmem>>, vector<1x128xbf16>
    %22 = arith.extf %21 : vector<1x128xbf16> to vector<1x128xf32>
    %cst_13 = arith.constant dense<0.000000e+00> : vector<64x128xf32>
    %23 = tpu.matmul %19, %20, %cst_13 {dimension_numbers = #tpu.dot_dimension_numbers<[1], [0], [0], [1], [0, 0, 1, 1], [], []>} : vector<64x512xbf16>, vector<512x128xbf16>, vector<64x128xf32> -> vector<64x128xf32>
    %24 = vector.broadcast %22 : vector<1x128xf32> to vector<64x128xf32>
    %25 = arith.addf %23, %24 : vector<64x128xf32>
    %26 = tpu.iota {dimensions = array<i32: 1>} : vector<64x128xi32>
    %c4_i32 = arith.constant 4 : i32
    %27 = vector.broadcast %c4_i32 : i32 to vector<64x128xi32>
    %28 = arith.cmpi slt, %26, %27 : vector<64x128xi32>
    %cst_14 = arith.constant -1.000000e+30 : f32
    %29 = vector.broadcast %cst_14 : f32 to vector<64x128xf32>
    %30 = arith.select %28, %25, %29 : vector<64x128xi1>, vector<64x128xf32>
    %cst_15 = arith.constant dense<0xFF800000> : vector<64xf32>
    %31 = vector.multi_reduction <maximumf>, %30, %cst_15 [1] : vector<64x128xf32> to vector<64xf32>
    %32 = vector.shape_cast %31 : vector<64xf32> to vector<64x1xf32>
    %33 = vector.broadcast %32 : vector<64x1xf32> to vector<64x128xf32>
    %34 = arith.subf %30, %33 : vector<64x128xf32>
    %35 = math.exp %34 : vector<64x128xf32>
    %cst_16 = arith.constant dense<0.000000e+00> : vector<64xf32>
    %36 = vector.multi_reduction <add>, %35, %cst_16 [1] : vector<64x128xf32> to vector<64xf32>
    %37 = vector.shape_cast %36 : vector<64xf32> to vector<64x1xf32>
    %38 = tpu.reciprocal %37 {approx = true} : vector<64x1xf32> -> vector<64x1xf32>
    %39 = vector.broadcast %38 : vector<64x1xf32> to vector<64x128xf32>
    %40 = arith.mulf %35, %39 : vector<64x128xf32>
    %c0_17 = arith.constant 0 : index
    %c0_18 = arith.constant 0 : index
    %41 = vector.load %arg5[%c0_17, %c0_18] : memref<64x128xf32, #tpu.memory_space<vmem>>, vector<64x128xf32>
    tpu.vector_store %arg5[%c0_17, %c0_18], %40 {strides = array<i32>} : memref<64x128xf32, #tpu.memory_space<vmem>>, vector<64x128xf32>,
    return
  }
  func.func @transform_0(%arg0: i32) -> (i32, i32) {
    %c0_i32 = arith.constant 0 : i32
    %c0_i32_0 = arith.constant 0 : i32
    return %arg0, %c0_i32 : i32, i32
  }
  func.func @transform_1(%arg0: i32) -> (i32, i32) {
    %c0_i32 = arith.constant 0 : i32
    %c0_i32_0 = arith.constant 0 : i32
    %c0_i32_1 = arith.constant 0 : i32
    return %c0_i32, %c0_i32_0 : i32, i32
  }
  func.func @transform_2(%arg0: i32) -> (i32, i32) {
    %c0_i32 = arith.constant 0 : i32
    %c0_i32_0 = arith.constant 0 : i32
    %c0_i32_1 = arith.constant 0 : i32
    return %c0_i32, %c0_i32_0 : i32, i32
  }
  func.func @transform_3(%arg0: i32) -> (i32, i32) {
    %c0_i32 = arith.constant 0 : i32
    %c0_i32_0 = arith.constant 0 : i32
    %c0_i32_1 = arith.constant 0 : i32
    return %c0_i32, %c0_i32_0 : i32, i32
  }
  func.func @transform_4(%arg0: i32) -> (i32, i32) {
    %c0_i32 = arith.constant 0 : i32
    %c0_i32_0 = arith.constant 0 : i32
    return %arg0, %c0_i32 : i32, i32
  }
}

</mosaic_0001>

<llo_original>
// kernel: tpu_custom_call.1
$region0: #{tpu_custom_call.1}
  #allocation0 [shape = 'u32[]', space=smem, size = 0x4, offset = 0x4, fixed_abs, tag = 'smem constant byte address 0x4 - core index']
  #allocation1 [shape = 'u32[144,128]{1,0:T(1,128)}', space=vmem, size = 0x12000, scoped, tag = 'internal scratch']
  %s0 = inlined_call_operand.vmem [shape: f32[128,16], index: 0, kind: input, shape index: {}]
  %s1 = inlined_call_operand.hbm [shape: bf16[24,1024], index: 1, kind: input, shape index: {}]
  %s2 = inlined_call_operand.hbm [shape: bf16[1032,512], index: 2, kind: input, shape index: {}]
  %s3 = inlined_call_operand.hbm [shape: bf16[520,128], index: 3, kind: input, shape index: {}]
  %s4 = inlined_call_operand.hbm [shape: f32[128,128], index: 4, kind: output, shape index: {}]
  %s5 = sld [smem:[#allocation0]]
  $region61: #{tpu_custom_call.1} parent=0
    _
  %s7 = ssub.s32 1, %s5
  %s8 = scalar_select 0, %s7, %s5
  $region1: #{tpu_custom_call.1} parent=0
    #allocation2 [shape = 'u8[49152]{0}', space=vmem, size = 0xc000, scoped, tag = 'input window, operand 1, single buffered']
    #allocation3 [shape = 's32[2]{0}', space=sflag, size = 0x8, scoped, tag = 'scoped memory for tpu_custom_call.1']
    #allocation4 [shape = 's32[2]{0}', space=sflag, size = 0x8, scoped, tag = 'scoped memory for tpu_custom_call.1']
    #allocation5 [shape = 'u8[1056768]{0}', space=vmem, size = 0x102000, scoped, tag = 'input window, operand 2, single buffered']
    #allocation6 [shape = 's32[1]{0}', space=sflag, size = 0x4, scoped, tag = 'scoped memory for tpu_custom_call.1']
    #allocation7 [shape = 'u8[133120]{0}', space=vmem, size = 0x20800, scoped, tag = 'input window, operand 3, single buffered']
    #allocation8 [shape = 'u8[65536]{0}', space=vmem, size = 0x10000, scoped, tag = 'output window, operand 0']
    %9 = vsyncpa [#allocation3], 0
    %10 = vsyncpa [#allocation6], 0
    %11 = vsyncpa [#allocation4], 0
    %s12 = scalar_lea.sflag [#allocation4], 1
    %13 = vsyncpa %s12, 0
    loop: start=0, step=1, limit=4
    $region2: #{tpu_custom_call.1} parent=1 // loop_pre_header
      _
    $region3: #{tpu_custom_call.1} parent=1 // loop_header
      %s15 = sphi 0, %s19
      %p16 = scmp.ge.s32.totalorder %s15, 4
      %s25 = sphi 0, %s27
      %s28 = sphi 0, %s25
      %s29 = sphi 0, %s28
      %s45 = sphi 0, %s29
      %s49 = sphi 0, %s49
      %s51 = sphi 0, %s49
      %s52 = sphi 0, %s51
      %s66 = sphi 0, %s52
      %s70 = sphi 0, %s70
      %s72 = sphi 0, %s70
      %s73 = sphi 0, %s72
      %s87 = sphi 0, %s73
      %s91 = sphi 0, %s91
      %s93 = sphi 0, %s91
      %s94 = sphi 0, %s93
      %s108 = sphi 0, %s94
      %s114 = sphi 0, %s116
      %s117 = sphi 0, %s114
      %s118 = sphi 0, %s117
      %s134 = sphi 0, %s118
    $region4: #{tpu_custom_call.1} parent=1 // loop_header_branch
      %18 = sbr.rel (%p16) target = $region8
    $region5: #{tpu_custom_call.1} parent=1 // loop_body
      %s20 = ssub.s32 %s15, 1
      %s21 = ssub.s32 %s15, 2
      %s22 = sadd.s32 %s15, 1
      %s23 = ssub.s32 %s15, %s22
      %p24 = scmp.eq.s32.totalorder %s23, 0
      %s26 = sadd.s32 %s25, 1
      %s27 = scalar_select %p24, %s25, %s26
      %p30 = pneg %p24
      %p31 = scmp.eq.s32.totalorder %s15, 1
      %p32 = por %p30, %p31
      %p33 = scmp.ne.s32.totalorder %s25, %s28
      %p34 = scmp.eq.s32.totalorder %s15, 0
      %p35 = por %p33, %p34
      %p36 = scmp.ne.s32.totalorder %s25, %s28
      %p37 = scmp.eq.s32.totalorder %s20, 1
      %p38 = por %p36, %p37
      %p39 = scmp.ne.s32.totalorder %s28, %s29
      %p40 = scmp.eq.s32.totalorder %s20, 0
      %p41 = por %p39, %p40
      %p42 = scmp.ne.s32.totalorder %s28, %s29
      %p43 = scmp.eq.s32.totalorder %s21, 1
      %p44 = por %p42, %p43
      %p46 = scmp.ne.s32.totalorder %s29, %s45
      %p47 = scmp.eq.s32.totalorder %s21, 0
      %p48 = por %p46, %p47
      %s50 = sadd.s32 %s49, 1
      %p53 = scmp.eq.s32.totalorder %s15, 1
      %p54 = scmp.ne.s32.totalorder %s49, %s51
      %p55 = scmp.eq.s32.totalorder %s15, 0
      %p56 = por %p54, %p55
      %p57 = scmp.ne.s32.totalorder %s49, %s51
      %p58 = scmp.eq.s32.totalorder %s20, 1
      %p59 = por %p57, %p58
      %p60 = scmp.ne.s32.totalorder %s51, %s52
      %p61 = scmp.eq.s32.totalorder %s20, 0
      %p62 = por %p60, %p61
      %p63 = scmp.ne.s32.totalorder %s51, %s52
      %p64 = scmp.eq.s32.totalorder %s21, 1
      %p65 = por %p63, %p64
      %p67 = scmp.ne.s32.totalorder %s52, %s66
      %p68 = scmp.eq.s32.totalorder %s21, 0
      %p69 = por %p67, %p68
      %s71 = sadd.s32 %s70, 1
      %p74 = scmp.eq.s32.totalorder %s15, 1
      %p75 = scmp.ne.s32.totalorder %s70, %s72
      %p76 = scmp.eq.s32.totalorder %s15, 0
      %p77 = por %p75, %p76
      %p78 = scmp.ne.s32.totalorder %s70, %s72
      %p79 = scmp.eq.s32.totalorder %s20, 1
      %p80 = por %p78, %p79
      %p81 = scmp.ne.s32.totalorder %s72, %s73
      %p82 = scmp.eq.s32.totalorder %s20, 0
      %p83 = por %p81, %p82
      %p84 = scmp.ne.s32.totalorder %s72, %s73
      %p85 = scmp.eq.s32.totalorder %s21, 1
      %p86 = por %p84, %p85
      %p88 = scmp.ne.s32.totalorder %s73, %s87
      %p89 = scmp.eq.s32.totalorder %s21, 0
      %p90 = por %p88, %p89
      %s92 = sadd.s32 %s91, 1
      %p95 = scmp.eq.s32.totalorder %s15, 1
      %p96 = scmp.ne.s32.totalorder %s91, %s93
      %p97 = scmp.eq.s32.totalorder %s15, 0
      %p98 = por %p96, %p97
      %p99 = scmp.ne.s32.totalorder %s91, %s93
      %p100 = scmp.eq.s32.totalorder %s20, 1
      %p101 = por %p99, %p100
      %p102 = scmp.ne.s32.totalorder %s93, %s94
      %p103 = scmp.eq.s32.totalorder %s20, 0
      %p104 = por %p102, %p103
      %p105 = scmp.ne.s32.totalorder %s93, %s94
      %p106 = scmp.eq.s32.totalorder %s21, 1
      %p107 = por %p105, %p106
      %p109 = scmp.ne.s32.totalorder %s94, %s108
      %p110 = scmp.eq.s32.totalorder %s21, 0
      %p111 = por %p109, %p110
      %s112 = ssub.s32 %s15, %s22
      %p113 = scmp.eq.s32.totalorder %s112, 0
      %s115 = sadd.s32 %s114, 1
      %s116 = scalar_select %p113, %s114, %s115
      %p119 = pneg %p113
      %p120 = scmp.eq.s32.totalorder %s15, 1
      %p121 = por %p119, %p120
      %p122 = scmp.ne.s32.totalorder %s114, %s117
      %p123 = scmp.eq.s32.totalorder %s15, 0
      %p124 = por %p122, %p123
      %p125 = scmp.ne.s32.totalorder %s114, %s117
      %p126 = scmp.eq.s32.totalorder %s20, 1
      %p127 = por %p125, %p126
      %p128 = scmp.ne.s32.totalorder %s117, %s118
      %p129 = scmp.eq.s32.totalorder %s20, 0
      %p130 = por %p128, %p129
      %p131 = scmp.ne.s32.totalorder %s117, %s118
      %p132 = scmp.eq.s32.totalorder %s21, 1
      %p133 = por %p131, %p132
      %p135 = scmp.ne.s32.totalorder %s118, %s134
      %p136 = scmp.eq.s32.totalorder %s21, 0
      %p137 = por %p135, %p136
      %p138 = scmp.le.s32.totalorder 1, %s15
      %p139 = scmp.lt.s32.totalorder %s15, 3
      %p140 = pnand %p138, %p139
      %p141 = pneg %p140
      // Predicated region
      $region9: #{tpu_custom_call.1} parent=5 // pred_check
        _
      $region10: #{tpu_custom_call.1} parent=5 // pred_check_branch
        %143 = sbr.rel (%p140) target = $region12
      $region11: #{tpu_custom_call.1} parent=5 // pred_region
        %s144 = ssub.s32 %s15, 1
        // Predicated region
        $region13: #{tpu_custom_call.1} parent=11 // pred_check
          %p145 = pneg %p62
        $region14: #{tpu_custom_call.1} parent=11 // pred_check_branch
          %147 = sbr.rel (%p145) target = $region16
        $region15: #{tpu_custom_call.1} parent=11 // pred_region
          %s149 = ssub.s32 1536, 1536
          %150 = vsyncadd [#allocation3], %s149
          %s151 = sshll.u32 [#allocation2], 4
          %s152 = int_to_ptr.vmem [resolvable:$true] %s151
          %157 = dma.hbm_to_vmem [thread:$0]  %s1, 1536, %s152, [#allocation3], 512, 512, 32
        $region16: #{tpu_custom_call.1} parent=11 // pred_fallthru
          _
        // Predicated region
        $region17: #{tpu_custom_call.1} parent=11 // pred_check
          %p158 = pneg %p83
        $region18: #{tpu_custom_call.1} parent=11 // pred_check_branch
          %160 = sbr.rel (%p158) target = $region20
        $region19: #{tpu_custom_call.1} parent=11 // pred_region
          %s162 = ssub.s32 33024, 33024
          %163 = vsyncadd [#allocation6], %s162
          %s164 = sshll.u32 [#allocation5], 4
          %s165 = int_to_ptr.vmem [resolvable:$true] %s164
          %170 = dma.hbm_to_vmem [thread:$0]  %s2, 33024, %s165, [#allocation6], 256, 256, 16
        $region20: #{tpu_custom_call.1} parent=11 // pred_fallthru
          _
        // Predicated region
        $region21: #{tpu_custom_call.1} parent=11 // pred_check
          %p171 = pneg %p104
        $region22: #{tpu_custom_call.1} parent=11 // pred_check_branch
          %173 = sbr.rel (%p171) target = $region24
        $region23: #{tpu_custom_call.1} parent=11 // pred_region
          %s175 = ssub.s32 4160, 4160
          %176 = vsyncadd [#allocation6], %s175
          %s177 = sshll.u32 [#allocation7], 4
          %s178 = int_to_ptr.vmem [resolvable:$true] %s177
          %183 = dma.hbm_to_vmem [thread:$0]  %s3, 4160, %s178, [#allocation6], 64, 64, 4
        $region24: #{tpu_custom_call.1} parent=11 // pred_fallthru
          _
      $region12: #{tpu_custom_call.1} parent=5 // pred_fallthru
        _
      %p184 = scmp.lt.s32.totalorder %s15, 2
      // Predicated region
      $region25: #{tpu_custom_call.1} parent=5 // pred_check
        %p185 = pneg %p184
      $region26: #{tpu_custom_call.1} parent=5 // pred_check_branch
        %187 = sbr.rel (%p185) target = $region28
      $region27: #{tpu_custom_call.1} parent=5 // pred_region
        // Predicated region
        $region29: #{tpu_custom_call.1} parent=27 // pred_check
          %p188 = pneg %p35
        $region30: #{tpu_custom_call.1} parent=27 // pred_check_branch
          %190 = sbr.rel (%p188) target = $region32
        $region31: #{tpu_custom_call.1} parent=27 // pred_region
          %s191 = smul.u32 8, %s15
          %p192 = scmp.lt.s32.totalorder %s191, 15
          %s193 = scalar_select %p192, %s191, 15
          %s194 = smul.addr %s193, 8
          %s195 = scalar_lea.vmem %s0, %s194
          %s196 = smul.u32 8, %s15
        $region32: #{tpu_custom_call.1} parent=27 // pred_fallthru
          _
      $region28: #{tpu_custom_call.1} parent=5 // pred_fallthru
        _
      %p197 = scmp.le.s32.totalorder 1, %s15
      %p198 = scmp.lt.s32.totalorder %s15, 3
      %p199 = pnand %p197, %p198
      %p200 = pneg %p199
      // Predicated region
      $region33: #{tpu_custom_call.1} parent=5 // pred_check
        _
      $region34: #{tpu_custom_call.1} parent=5 // pred_check_branch
        %202 = sbr.rel (%p199) target = $region36
      $region35: #{tpu_custom_call.1} parent=5 // pred_region
        %s203 = ssub.s32 %s15, 1
        // Predicated region
        $region37: #{tpu_custom_call.1} parent=35 // pred_check
          %p204 = pneg %p62
        $region38: #{tpu_custom_call.1} parent=35 // pred_check_branch
          %206 = sbr.rel (%p204) target = $region40
        $region39: #{tpu_custom_call.1} parent=35 // pred_region
          %207 = dma.done [#allocation3], 1536
        $region40: #{tpu_custom_call.1} parent=35 // pred_fallthru
          _
        // Predicated region
        $region41: #{tpu_custom_call.1} parent=35 // pred_check
          %p208 = pneg %p83
        $region42: #{tpu_custom_call.1} parent=35 // pred_check_branch
          %210 = sbr.rel (%p208) target = $region44
        $region43: #{tpu_custom_call.1} parent=35 // pred_region
          %211 = dma.done [#allocation6], 33024
        $region44: #{tpu_custom_call.1} parent=35 // pred_fallthru
          _
        // Predicated region
        $region45: #{tpu_custom_call.1} parent=35 // pred_check
          %p212 = pneg %p104
        $region46: #{tpu_custom_call.1} parent=35 // pred_check_branch
          %214 = sbr.rel (%p212) target = $region48
        $region47: #{tpu_custom_call.1} parent=35 // pred_region
          %215 = dma.done [#allocation6], 4160
        $region48: #{tpu_custom_call.1} parent=35 // pred_fallthru
          _
        %s216 = smul.u32 8, %s20
        %p217 = scmp.lt.s32.totalorder %s216, 15
        %s218 = scalar_select %p217, %s216, 15
        %s219 = smul.addr %s218, 8
        %s220 = scalar_lea.vmem %s0, %s219
        %p221 = pneg %p41
        %p222 = pneg %p38
        %p223 = pneg %p62
        %p224 = pneg %p59
        %p225 = pneg %p83
        %p226 = pneg %p80
        %p227 = pneg %p104
        %p228 = pneg %p101
        %p229 = pneg %p130
        %p230 = pneg %p127
        %s231 = sand.u32 %s117, 1
        %s232 = scalar_lea.sflag [#allocation4], %s231
        %s233 = sand.u32 %s117, 1
        %s234 = smul.addr %s233, 64
        %s235 = scalar_lea.vmem [#allocation8], %s234
        %s236 = smul.u32 8, %s20
        %p237 = scmp.lt.s32.totalorder %s236, 15
        %s238 = scalar_select %p237, %s236, 15
        %s239 = smul.addr %s238, 8
        %s240 = scalar_lea.vmem %s0, %s239
        %s241 = smul.u32 8, %s20
        %s242 = smul.u32 8, %s20
        %v244 = vld [vmem:[%s240] sm:$0xff]
        %v245 = vld [vmem:[%s240 + $0x8] sm:$0xff]
        %v246 = vld [vmem:[%s240 + $0x10] sm:$0xff]
        %v247 = vld [vmem:[%s240 + $0x18] sm:$0xff]
        %v248 = vld [vmem:[%s240 + $0x20] sm:$0xff]
        %v249 = vld [vmem:[%s240 + $0x28] sm:$0xff]
        %v250 = vld [vmem:[%s240 + $0x30] sm:$0xff]
        %v251 = vld [vmem:[%s240 + $0x38] sm:$0xff]
        %v252 = vpack.c.bf16 %v245, %v244
        %v253 = vpack.c.bf16 %v247, %v246
        %v254 = vpack.c.bf16 %v249, %v248
        %v255 = vpack.c.bf16 %v251, %v250
        %v256 = vld [vmem:[#allocation2] sm:$0xff]
        %v257 = vld [vmem:[#allocation2 + $0x8] sm:$0xff]
        %v258 = vld [vmem:[#allocation2 + $0x10] sm:$0xff]
        %v259 = vld [vmem:[#allocation2 + $0x18] sm:$0xff]
        %v260 = vld [vmem:[#allocation2 + $0x20] sm:$0xff]
        %v261 = vld [vmem:[#allocation2 + $0x28] sm:$0xff]
        %v262 = vld [vmem:[#allocation2 + $0x30] sm:$0xff]
        %v263 = vld [vmem:[#allocation2 + $0x38] sm:$0xff]
        %v264 = vld [vmem:[#allocation2 + $0x40] sm:$0x11]
        %v265 = vld [vmem:[#allocation2 + $0x48] sm:$0x11]
        %v266 = vld [vmem:[#allocation2 + $0x50] sm:$0x11]
        %v267 = vld [vmem:[#allocation2 + $0x58] sm:$0x11]
        %v268 = vunpack.c.l.bf16 %v264
        %v269 = vunpack.c.h.bf16 %v264
        %v270 = vunpack.c.l.bf16 %v265
        %v271 = vunpack.c.h.bf16 %v265
        %v272 = vunpack.c.l.bf16 %v266
        %v273 = vunpack.c.h.bf16 %v266
        %v274 = vunpack.c.l.bf16 %v267
        %v275 = vunpack.c.h.bf16 %v267
        %v276 = vlaneseq
        %v277 = vshrl.u32 %v276, 7
        %v278 = vsub.s32 0, %v277
        %v279 = vrot.slane %v268, %v278
        %v280 = vlaneseq
        %v281 = vshrl.u32 %v280, 7
        %v282 = vsub.s32 0, %v281
        %v283 = vrot.slane %v269, %v282
        %v284 = vlaneseq
        %v285 = vshrl.u32 %v284, 7
        %v286 = vsub.s32 0, %v285
        %v287 = vrot.slane %v270, %v286
        %v288 = vlaneseq
        %v289 = vshrl.u32 %v288, 7
        %v290 = vsub.s32 0, %v289
        %v291 = vrot.slane %v271, %v290
        %v292 = vlaneseq
        %v293 = vshrl.u32 %v292, 7
        %v294 = vsub.s32 0, %v293
        %v295 = vrot.slane %v272, %v294
        %v296 = vlaneseq
        %v297 = vshrl.u32 %v296, 7
        %v298 = vsub.s32 0, %v297
        %v299 = vrot.slane %v273, %v298
        %v300 = vlaneseq
        %v301 = vshrl.u32 %v300, 7
        %v302 = vsub.s32 0, %v301
        %v303 = vrot.slane %v274, %v302
        %v304 = vlaneseq
        %v305 = vshrl.u32 %v304, 7
        %v306 = vsub.s32 0, %v305
        %v307 = vrot.slane %v275, %v306
        %v316 = vunpack.c.l.b16 %v256
        %v317 = vunpack.c.h.b16 %v256
        %v318 = vunpack.c.l.b16 %v257
        %v319 = vunpack.c.h.b16 %v257
        %v320 = vunpack.c.l.b16 %v258
        %v321 = vunpack.c.h.b16 %v258
        %v322 = vunpack.c.l.b16 %v259
        %v323 = vunpack.c.h.b16 %v259
        %v324 = vunpack.c.l.b16 %v260
        %v325 = vunpack.c.h.b16 %v260
        %v326 = vunpack.c.l.b16 %v261
        %v327 = vunpack.c.h.b16 %v261
        %v328 = vunpack.c.l.b16 %v262
        %v329 = vunpack.c.h.b16 %v262
        %v330 = vunpack.c.l.b16 %v263
        %v331 = vunpack.c.h.b16 %v263
        %v332 = vpack.c.b16 %v324, %v316
        %v333 = vpack.c.b16 %v325, %v317
        %v334 = vpack.c.b16 %v326, %v318
        %v335 = vpack.c.b16 %v327, %v319
        %v336 = vpack.c.b16 %v328, %v320
        %v337 = vpack.c.b16 %v329, %v321
        %v338 = vpack.c.b16 %v330, %v322
        %v339 = vpack.c.b16 %v331, %v323
        %vm348 = vcmask 130048
        %v350 = vsel %vm348, %v252, 0
        %v353 = vsel %vm348, %v253, 0
        %v356 = vsel %vm348, %v254, 0
        %v359 = vsel %vm348, %v255, 0
        %361 = vmatprep.subr.bf16.mxu0 %v333
        %362 = vmatpush1.bf16.msra.mxu0 %v332
        %363 = vmatprep.subr.bf16.mxu0 0
        %364 = vmatpush1.bf16.msra.mxu0 0
        %365 = vmatprep.subr.bf16.mxu0 0
        %366 = vmatpush1.bf16.msra.mxu0 0
        %367 = vmatprep.subr.bf16.mxu0 0
        %368 = vmatpush1.bf16.msra.mxu0 0
        %369 = vmatprep.subr.bf16.mxu0 0
        %370 = vmatpush1.bf16.msra.mxu0 0
        %371 = vmatprep.subr.bf16.mxu0 0
        %372 = vmatpush1.bf16.msra.mxu0 0
        %373 = vmatprep.subr.bf16.mxu0 0
        %374 = vmatpush1.bf16.msra.mxu0 0
        %375 = vmatprep.subr.bf16.mxu0 0
        %376 = vmatpush1.bf16.msra.mxu0 0
        %377 = vmatprep.subr.bf16.mxu0 0
        %378 = vmatpush1.bf16.msra.mxu0 0
        %379 = vmatprep.subr.bf16.mxu0 0
        %380 = vmatpush1.bf16.msra.mxu0 0
        %381 = vmatprep.subr.bf16.mxu0 0
        %382 = vmatpush1.bf16.msra.mxu0 0
        %383 = vmatprep.subr.bf16.mxu0 0
        %384 = vmatpush1.bf16.msra.mxu0 0
        %385 = vmatprep.subr.bf16.mxu0 0
        %386 = vmatpush1.bf16.msra.mxu0 0
        %387 = vmatprep.subr.bf16.mxu0 0
        %388 = vmatpush1.bf16.msra.mxu0 0
        %389 = vmatprep.subr.bf16.mxu0 0
        %390 = vmatpush1.bf16.msra.mxu0 0
        %391 = vmatprep.subr.bf16.mxu0 0
        %392 = vmatpush1.bf16.msra.mxu0 0
        %393 = vmatprep.mubr.bf16.mxu0 0
        %394 = vmatmul.mubr.bf16.gmra.mrb[0].mxu0 %v350
        %v395 = vpop.f32.mrb[0].mxu0
        %v396 = vadd.f32 %v279, %v395
        %v397 = vpop.f32.mrb[0].mxu0
        %v398 = vadd.f32 %v283, %v397
        %v399 = vpop.f32.mrb[0].mxu0
        %v400 = vadd.f32 %v279, %v399
        %v401 = vpop.f32.mrb[0].mxu0
        %v402 = vadd.f32 %v283, %v401
        %403 = vmatprep.mubr.bf16.mxu0 0
        %404 = vmatmul.mubr.bf16.gmra.mrb[0].mxu0 %v353
        %v405 = vpop.f32.mrb[0].mxu0
        %v406 = vadd.f32 %v279, %v405
        %v407 = vpop.f32.mrb[0].mxu0
        %v408 = vadd.f32 %v283, %v407
        %v409 = vpop.f32.mrb[0].mxu0
        %v410 = vadd.f32 %v279, %v409
        %v411 = vpop.f32.mrb[0].mxu0
        %v412 = vadd.f32 %v283, %v411
        %413 = vmatprep.mubr.bf16.mxu0 0
        %414 = vmatmul.mubr.bf16.gmra.mrb[0].mxu0 %v356
        %v415 = vpop.f32.mrb[0].mxu0
        %v416 = vadd.f32 %v279, %v415
        %v417 = vpop.f32.mrb[0].mxu0
        %v418 = vadd.f32 %v283, %v417
        %v419 = vpop.f32.mrb[0].mxu0
        %v420 = vadd.f32 %v279, %v419
        %v421 = vpop.f32.mrb[0].mxu0
        %v422 = vadd.f32 %v283, %v421
        %423 = vmatprep.mubr.bf16.mxu0 0
        %424 = vmatmul.mubr.bf16.gmra.mrb[0].mxu0 %v359
        %v425 = vpop.f32.mrb[0].mxu0
        %v426 = vadd.f32 %v279, %v425
        %v427 = vpop.f32.mrb[0].mxu0
        %v428 = vadd.f32 %v283, %v427
        %v429 = vpop.f32.mrb[0].mxu0
        %v430 = vadd.f32 %v279, %v429
        %v431 = vpop.f32.mrb[0].mxu0
        %v432 = vadd.f32 %v283, %v431
        %433 = vdwg.mxu0
        %434 = vmatprep.subr.bf16.mxu0 %v335
        %435 = vmatpush1.bf16.msra.mxu0 %v334
        %436 = vmatprep.subr.bf16.mxu0 0
        %437 = vmatpush1.bf16.msra.mxu0 0
        %438 = vmatprep.subr.bf16.mxu0 0
        %439 = vmatpush1.bf16.msra.mxu0 0
        %440 = vmatprep.subr.bf16.mxu0 0
        %441 = vmatpush1.bf16.msra.mxu0 0
        %442 = vmatprep.subr.bf16.mxu0 0
        %443 = vmatpush1.bf16.msra.mxu0 0
        %444 = vmatprep.subr.bf16.mxu0 0
        %445 = vmatpush1.bf16.msra.mxu0 0
        %446 = vmatprep.subr.bf16.mxu0 0
        %447 = vmatpush1.bf16.msra.mxu0 0
        %448 = vmatprep.subr.bf16.mxu0 0
        %449 = vmatpush1.bf16.msra.mxu0 0
        %450 = vmatprep.subr.bf16.mxu0 0
        %451 = vmatpush1.bf16.msra.mxu0 0
        %452 = vmatprep.subr.bf16.mxu0 0
        %453 = vmatpush1.bf16.msra.mxu0 0
        %454 = vmatprep.subr.bf16.mxu0 0
        %455 = vmatpush1.bf16.msra.mxu0 0
        %456 = vmatprep.subr.bf16.mxu0 0
        %457 = vmatpush1.bf16.msra.mxu0 0
        %458 = vmatprep.subr.bf16.mxu0 0
        %459 = vmatpush1.bf16.msra.mxu0 0
        %460 = vmatprep.subr.bf16.mxu0 0
        %461 = vmatpush1.bf16.msra.mxu0 0
        %462 = vmatprep.subr.bf16.mxu0 0
        %463 = vmatpush1.bf16.msra.mxu0 0
        %464 = vmatprep.subr.bf16.mxu0 0
        %465 = vmatpush1.bf16.msra.mxu0 0
        %466 = vmatprep.mubr.bf16.mxu0 0
        %467 = vmatmul.mubr.bf16.gmra.mrb[0].mxu0 %v350
        %v468 = vpop.f32.mrb[0].mxu0
        %v469 = vadd.f32 %v287, %v468
        %v470 = vpop.f32.mrb[0].mxu0
        %v471 = vadd.f32 %v291, %v470
        %v472 = vpop.f32.mrb[0].mxu0
        %v473 = vadd.f32 %v287, %v472
        %v474 = vpop.f32.mrb[0].mxu0
        %v475 = vadd.f32 %v291, %v474
        %476 = vmatprep.mubr.bf16.mxu0 0
        %477 = vmatmul.mubr.bf16.gmra.mrb[0].mxu0 %v353
        %v478 = vpop.f32.mrb[0].mxu0
        %v479 = vadd.f32 %v287, %v478
        %v480 = vpop.f32.mrb[0].mxu0
        %v481 = vadd.f32 %v291, %v480
        %v482 = vpop.f32.mrb[0].mxu0
        %v483 = vadd.f32 %v287, %v482
        %v484 = vpop.f32.mrb[0].mxu0
        %v485 = vadd.f32 %v291, %v484
        %486 = vmatprep.mubr.bf16.mxu0 0
        %487 = vmatmul.mubr.bf16.gmra.mrb[0].mxu0 %v356
        %v488 = vpop.f32.mrb[0].mxu0
        %v489 = vadd.f32 %v287, %v488
        %v490 = vpop.f32.mrb[0].mxu0
        %v491 = vadd.f32 %v291, %v490
        %v492 = vpop.f32.mrb[0].mxu0
        %v493 = vadd.f32 %v287, %v492
        %v494 = vpop.f32.mrb[0].mxu0
        %v495 = vadd.f32 %v291, %v494
        %496 = vmatprep.mubr.bf16.mxu0 0
        %497 = vmatmul.mubr.bf16.gmra.mrb[0].mxu0 %v359
        %v498 = vpop.f32.mrb[0].mxu0
        %v499 = vadd.f32 %v287, %v498
        %v500 = vpop.f32.mrb[0].mxu0
        %v501 = vadd.f32 %v291, %v500
        %v502 = vpop.f32.mrb[0].mxu0
        %v503 = vadd.f32 %v287, %v502
        %v504 = vpop.f32.mrb[0].mxu0
        %v505 = vadd.f32 %v291, %v504
        %506 = vdwg.mxu0
        %507 = vmatprep.subr.bf16.mxu0 %v337
        %508 = vmatpush1.bf16.msra.mxu0 %v336
        %509 = vmatprep.subr.bf16.mxu0 0
        %510 = vmatpush1.bf16.msra.mxu0 0
        %511 = vmatprep.subr.bf16.mxu0 0
        %512 = vmatpush1.bf16.msra.mxu0 0
        %513 = vmatprep.subr.bf16.mxu0 0
        %514 = vmatpush1.bf16.msra.mxu0 0
        %515 = vmatprep.subr.bf16.mxu0 0
        %516 = vmatpush1.bf16.msra.mxu0 0
        %517 = vmatprep.subr.bf16.mxu0 0
        %518 = vmatpush1.bf16.msra.mxu0 0
        %519 = vmatprep.subr.bf16.mxu0 0
        %520 = vmatpush1.bf16.msra.mxu0 0
        %521 = vmatprep.subr.bf16.mxu0 0
        %522 = vmatpush1.bf16.msra.mxu0 0
        %523 = vmatprep.subr.bf16.mxu0 0
        %524 = vmatpush1.bf16.msra.mxu0 0
        %525 = vmatprep.subr.bf16.mxu0 0
        %526 = vmatpush1.bf16.msra.mxu0 0
        %527 = vmatprep.subr.bf16.mxu0 0
        %528 = vmatpush1.bf16.msra.mxu0 0
        %529 = vmatprep.subr.bf16.mxu0 0
        %530 = vmatpush1.bf16.msra.mxu0 0
        %531 = vmatprep.subr.bf16.mxu0 0
        %532 = vmatpush1.bf16.msra.mxu0 0
        %533 = vmatprep.subr.bf16.mxu0 0
        %534 = vmatpush1.bf16.msra.mxu0 0
        %535 = vmatprep.subr.bf16.mxu0 0
        %536 = vmatpush1.bf16.msra.mxu0 0
        %537 = vmatprep.subr.bf16.mxu0 0
        %538 = vmatpush1.bf16.msra.mxu0 0
        %539 = vmatprep.mubr.bf16.mxu0 0
        %540 = vmatmul.mubr.bf16.gmra.mrb[0].mxu0 %v350
        %v541 = vpop.f32.mrb[0].mxu0
        %v542 = vadd.f32 %v295, %v541
        %v543 = vpop.f32.mrb[0].mxu0
        %v544 = vadd.f32 %v299, %v543
        %v545 = vpop.f32.mrb[0].mxu0
        %v546 = vadd.f32 %v295, %v545
        %v547 = vpop.f32.mrb[0].mxu0
        %v548 = vadd.f32 %v299, %v547
        %549 = vmatprep.mubr.bf16.mxu0 0
        %550 = vmatmul.mubr.bf16.gmra.mrb[0].mxu0 %v353
        %v551 = vpop.f32.mrb[0].mxu0
        %v552 = vadd.f32 %v295, %v551
        %v553 = vpop.f32.mrb[0].mxu0
        %v554 = vadd.f32 %v299, %v553
        %v555 = vpop.f32.mrb[0].mxu0
        %v556 = vadd.f32 %v295, %v555
        %v557 = vpop.f32.mrb[0].mxu0
        %v558 = vadd.f32 %v299, %v557
        %559 = vmatprep.mubr.bf16.mxu0 0
        %560 = vmatmul.mubr.bf16.gmra.mrb[0].mxu0 %v356
        %v561 = vpop.f32.mrb[0].mxu0
        %v562 = vadd.f32 %v295, %v561
        %v563 = vpop.f32.mrb[0].mxu0
        %v564 = vadd.f32 %v299, %v563
        %v565 = vpop.f32.mrb[0].mxu0
        %v566 = vadd.f32 %v295, %v565
        %v567 = vpop.f32.mrb[0].mxu0
        %v568 = vadd.f32 %v299, %v567
        %569 = vmatprep.mubr.bf16.mxu0 0
        %570 = vmatmul.mubr.bf16.gmra.mrb[0].mxu0 %v359
        %v571 = vpop.f32.mrb[0].mxu0
        %v572 = vadd.f32 %v295, %v571
        %v573 = vpop.f32.mrb[0].mxu0
        %v574 = vadd.f32 %v299, %v573
        %v575 = vpop.f32.mrb[0].mxu0
        %v576 = vadd.f32 %v295, %v575
        %v577 = vpop.f32.mrb[0].mxu0
        %v578 = vadd.f32 %v299, %v577
        %579 = vdwg.mxu0
        %580 = vmatprep.subr.bf16.mxu0 %v339
        %581 = vmatpush1.bf16.msra.mxu0 %v338
        %582 = vmatprep.subr.bf16.mxu0 0
        %583 = vmatpush1.bf16.msra.mxu0 0
        %584 = vmatprep.subr.bf16.mxu0 0
        %585 = vmatpush1.bf16.msra.mxu0 0
        %586 = vmatprep.subr.bf16.mxu0 0
        %587 = vmatpush1.bf16.msra.mxu0 0
        %588 = vmatprep.subr.bf16.mxu0 0
        %589 = vmatpush1.bf16.msra.mxu0 0
        %590 = vmatprep.subr.bf16.mxu0 0
        %591 = vmatpush1.bf16.msra.mxu0 0
        %592 = vmatprep.subr.bf16.mxu0 0
        %593 = vmatpush1.bf16.msra.mxu0 0
        %594 = vmatprep.subr.bf16.mxu0 0
        %595 = vmatpush1.bf16.msra.mxu0 0
        %596 = vmatprep.subr.bf16.mxu0 0
        %597 = vmatpush1.bf16.msra.mxu0 0
        %598 = vmatprep.subr.bf16.mxu0 0
        %599 = vmatpush1.bf16.msra.mxu0 0
        %600 = vmatprep.subr.bf16.mxu0 0
        %601 = vmatpush1.bf16.msra.mxu0 0
        %602 = vmatprep.subr.bf16.mxu0 0
        %603 = vmatpush1.bf16.msra.mxu0 0
        %604 = vmatprep.subr.bf16.mxu0 0
        %605 = vmatpush1.bf16.msra.mxu0 0
        %606 = vmatprep.subr.bf16.mxu0 0
        %607 = vmatpush1.bf16.msra.mxu0 0
        %608 = vmatprep.subr.bf16.mxu0 0
        %609 = vmatpush1.bf16.msra.mxu0 0
        %610 = vmatprep.subr.bf16.mxu0 0
        %611 = vmatpush1.bf16.msra.mxu0 0
        %612 = vmatprep.mubr.bf16.mxu0 0
        %613 = vmatmul.mubr.bf16.gmra.mrb[0].mxu0 %v350
        %v614 = vpop.f32.mrb[0].mxu0
        %v615 = vadd.f32 %v303, %v614
        %v616 = vpop.f32.mrb[0].mxu0
        %v617 = vadd.f32 %v307, %v616
        %v618 = vpop.f32.mrb[0].mxu0
        %v619 = vadd.f32 %v303, %v618
        %v620 = vpop.f32.mrb[0].mxu0
        %v621 = vadd.f32 %v307, %v620
        %622 = vmatprep.mubr.bf16.mxu0 0
        %623 = vmatmul.mubr.bf16.gmra.mrb[0].mxu0 %v353
        %v624 = vpop.f32.mrb[0].mxu0
        %v625 = vadd.f32 %v303, %v624
        %v626 = vpop.f32.mrb[0].mxu0
        %v627 = vadd.f32 %v307, %v626
        %v628 = vpop.f32.mrb[0].mxu0
        %v629 = vadd.f32 %v303, %v628
        %v630 = vpop.f32.mrb[0].mxu0
        %v631 = vadd.f32 %v307, %v630
        %632 = vmatprep.mubr.bf16.mxu0 0
        %633 = vmatmul.mubr.bf16.gmra.mrb[0].mxu0 %v356
        %v634 = vpop.f32.mrb[0].mxu0
        %v635 = vadd.f32 %v303, %v634
        %v636 = vpop.f32.mrb[0].mxu0
        %v637 = vadd.f32 %v307, %v636
        %v638 = vpop.f32.mrb[0].mxu0
        %v639 = vadd.f32 %v303, %v638
        %v640 = vpop.f32.mrb[0].mxu0
        %v641 = vadd.f32 %v307, %v640
        %642 = vmatprep.mubr.bf16.mxu0 0
        %643 = vmatmul.mubr.bf16.gmra.mrb[0].mxu0 %v359
        %v644 = vpop.f32.mrb[0].mxu0
        %v645 = vadd.f32 %v303, %v644
        %v646 = vpop.f32.mrb[0].mxu0
        %v647 = vadd.f32 %v307, %v646
        %v648 = vpop.f32.mrb[0].mxu0
        %v649 = vadd.f32 %v303, %v648
        %v650 = vpop.f32.mrb[0].mxu0
        %v651 = vadd.f32 %v307, %v650
        %652 = vdwg.mxu0
        %v653 = vmax.f32 %v396, 0.0
        %v654 = vmax.f32 %v398, 0.0
        %v655 = vmax.f32 %v469, 0.0
        %v656 = vmax.f32 %v471, 0.0
        %v657 = vmax.f32 %v542, 0.0
        %v658 = vmax.f32 %v544, 0.0
        %v659 = vmax.f32 %v615, 0.0
        %v660 = vmax.f32 %v617, 0.0
        %v661 = vmax.f32 %v400, 0.0
        %v662 = vmax.f32 %v402, 0.0
        %v663 = vmax.f32 %v473, 0.0
        %v664 = vmax.f32 %v475, 0.0
        %v665 = vmax.f32 %v546, 0.0
        %v666 = vmax.f32 %v548, 0.0
        %v667 = vmax.f32 %v619, 0.0
        %v668 = vmax.f32 %v621, 0.0
        %v669 = vmax.f32 %v406, 0.0
        %v670 = vmax.f32 %v408, 0.0
        %v671 = vmax.f32 %v479, 0.0
        %v672 = vmax.f32 %v481, 0.0
        %v673 = vmax.f32 %v552, 0.0
        %v674 = vmax.f32 %v554, 0.0
        %v675 = vmax.f32 %v625, 0.0
        %v676 = vmax.f32 %v627, 0.0
        %v677 = vmax.f32 %v410, 0.0
        %v678 = vmax.f32 %v412, 0.0
        %v679 = vmax.f32 %v483, 0.0
        %v680 = vmax.f32 %v485, 0.0
        %v681 = vmax.f32 %v556, 0.0
        %v682 = vmax.f32 %v558, 0.0
        %v683 = vmax.f32 %v629, 0.0
        %v684 = vmax.f32 %v631, 0.0
        %v685 = vmax.f32 %v416, 0.0
        %v686 = vmax.f32 %v418, 0.0
        %v687 = vmax.f32 %v489, 0.0
        %v688 = vmax.f32 %v491, 0.0
        %v689 = vmax.f32 %v562, 0.0
        %v690 = vmax.f32 %v564, 0.0
        %v691 = vmax.f32 %v635, 0.0
        %v692 = vmax.f32 %v637, 0.0
        %v693 = vmax.f32 %v420, 0.0
        %v694 = vmax.f32 %v422, 0.0
        %v695 = vmax.f32 %v493, 0.0
        %v696 = vmax.f32 %v495, 0.0
        %v697 = vmax.f32 %v566, 0.0
        %v698 = vmax.f32 %v568, 0.0
        %v699 = vmax.f32 %v639, 0.0
        %v700 = vmax.f32 %v641, 0.0
        %v701 = vmax.f32 %v426, 0.0
        %v702 = vmax.f32 %v428, 0.0
        %v703 = vmax.f32 %v499, 0.0
        %v704 = vmax.f32 %v501, 0.0
        %v705 = vmax.f32 %v572, 0.0
        %v706 = vmax.f32 %v574, 0.0
        %v707 = vmax.f32 %v645, 0.0
        %v708 = vmax.f32 %v647, 0.0
        %v709 = vmax.f32 %v430, 0.0
        %v710 = vmax.f32 %v432, 0.0
        %v711 = vmax.f32 %v503, 0.0
        %v712 = vmax.f32 %v505, 0.0
        %v713 = vmax.f32 %v576, 0.0
        %v714 = vmax.f32 %v578, 0.0
        %v715 = vmax.f32 %v649, 0.0
        %v716 = vmax.f32 %v651, 0.0
        %v717 = vpack.c.bf16 %v661, %v653
        %v718 = vpack.c.bf16 %v662, %v654
        %v719 = vpack.c.bf16 %v663, %v655
        %v720 = vpack.c.bf16 %v664, %v656
        %v721 = vpack.c.bf16 %v665, %v657
        %v722 = vpack.c.bf16 %v666, %v658
        %v723 = vpack.c.bf16 %v667, %v659
        %v724 = vpack.c.bf16 %v668, %v660
        %v725 = vpack.c.bf16 %v677, %v669
        %v726 = vpack.c.bf16 %v678, %v670
        %v727 = vpack.c.bf16 %v679, %v671
        %v728 = vpack.c.bf16 %v680, %v672
        %v729 = vpack.c.bf16 %v681, %v673
        %v730 = vpack.c.bf16 %v682, %v674
        %v731 = vpack.c.bf16 %v683, %v675
        %v732 = vpack.c.bf16 %v684, %v676
        %v733 = vpack.c.bf16 %v693, %v685
        %v734 = vpack.c.bf16 %v694, %v686
        %v735 = vpack.c.bf16 %v695, %v687
        %v736 = vpack.c.bf16 %v696, %v688
        %v737 = vpack.c.bf16 %v697, %v689
        %v738 = vpack.c.bf16 %v698, %v690
        %v739 = vpack.c.bf16 %v699, %v691
        %v740 = vpack.c.bf16 %v700, %v692
        %v741 = vpack.c.bf16 %v709, %v701
        %v742 = vpack.c.bf16 %v710, %v702
        %v743 = vpack.c.bf16 %v711, %v703
        %v744 = vpack.c.bf16 %v712, %v704
        %v745 = vpack.c.bf16 %v713, %v705
        %v746 = vpack.c.bf16 %v714, %v706
        %v747 = vpack.c.bf16 %v715, %v707
        %v748 = vpack.c.bf16 %v716, %v708
        %v749 = vld [vmem:[#allocation5] sm:$0xff]
        %v750 = vld [vmem:[#allocation5 + $0x8] sm:$0xff]
        %v751 = vld [vmem:[#allocation5 + $0x10] sm:$0xff]
        %v752 = vld [vmem:[#allocation5 + $0x18] sm:$0xff]
        %v753 = vld [vmem:[#allocation5 + $0x20] sm:$0xff]
        %v754 = vld [vmem:[#allocation5 + $0x28] sm:$0xff]
        %v755 = vld [vmem:[#allocation5 + $0x30] sm:$0xff]
        %v756 = vld [vmem:[#allocation5 + $0x38] sm:$0xff]
        %v757 = vld [vmem:[#allocation5 + $0x40] sm:$0xff]
        %v758 = vld [vmem:[#allocation5 + $0x48] sm:$0xff]
        %v759 = vld [vmem:[#allocation5 + $0x50] sm:$0xff]
        %v760 = vld [vmem:[#allocation5 + $0x58] sm:$0xff]
        %v761 = vld [vmem:[#allocation5 + $0x60] sm:$0xff]
        %v762 = vld [vmem:[#allocation5 + $0x68] sm:$0xff]
        %v763 = vld [vmem:[#allocation5 + $0x70] sm:$0xff]
        %v764 = vld [vmem:[#allocation5 + $0x78] sm:$0xff]
        %v765 = vld [vmem:[#allocation5 + $0x80] sm:$0xff]
        %v766 = vld [vmem:[#allocation5 + $0x88] sm:$0xff]
        %v767 = vld [vmem:[#allocation5 + $0x90] sm:$0xff]
        %v768 = vld [vmem:[#allocation5 + $0x98] sm:$0xff]
        %v769 = vld [vmem:[#allocation5 + $0xa0] sm:$0xff]
        %v770 = vld [vmem:[#allocation5 + $0xa8] sm:$0xff]
        %v771 = vld [vmem:[#allocation5 + $0xb0] sm:$0xff]
        %v772 = vld [vmem:[#allocation5 + $0xb8] sm:$0xff]
        %v773 = vld [vmem:[#allocation5 + $0xc0] sm:$0xff]
        %v774 = vld [vmem:[#allocation5 + $0xc8] sm:$0xff]
        %v775 = vld [vmem:[#allocation5 + $0xd0] sm:$0xff]
        %v776 = vld [vmem:[#allocation5 + $0xd8] sm:$0xff]
        %v777 = vld [vmem:[#allocation5 + $0xe0] sm:$0xff]
        %v778 = vld [vmem:[#allocation5 + $0xe8] sm:$0xff]
        %v779 = vld [vmem:[#allocation5 + $0xf0] sm:$0xff]
        %v780 = vld [vmem:[#allocation5 + $0xf8] sm:$0xff]
        %v781 = vld [vmem:[#allocation5 + $0x100] sm:$0xff]
        %v782 = vld [vmem:[#allocation5 + $0x108] sm:$0xff]
        %v783 = vld [vmem:[#allocation5 + $0x110] sm:$0xff]
        %v784 = vld [vmem:[#allocation5 + $0x118] sm:$0xff]
        %v785 = vld [vmem:[#allocation5 + $0x120] sm:$0xff]
        %v786 = vld [vmem:[#allocation5 + $0x128] sm:$0xff]
        %v787 = vld [vmem:[#allocation5 + $0x130] sm:$0xff]
        %v788 = vld [vmem:[#allocation5 + $0x138] sm:$0xff]
        %v789 = vld [vmem:[#allocation5 + $0x140] sm:$0xff]
        %v790 = vld [vmem:[#allocation5 + $0x148] sm:$0xff]
        %v791 = vld [vmem:[#allocation5 + $0x150] sm:$0xff]
        %v792 = vld [vmem:[#allocation5 + $0x158] sm:$0xff]
        %v793 = vld [vmem:[#allocation5 + $0x160] sm:$0xff]
        %v794 = vld [vmem:[#allocation5 + $0x168] sm:$0xff]
        %v795 = vld [vmem:[#allocation5 + $0x170] sm:$0xff]
        %v796 = vld [vmem:[#allocation5 + $0x178] sm:$0xff]
        %v797 = vld [vmem:[#allocation5 + $0x180] sm:$0xff]
        %v798 = vld [vmem:[#allocation5 + $0x188] sm:$0xff]
        %v799 = vld [vmem:[#allocation5 + $0x190] sm:$0xff]
        %v800 = vld [vmem:[#allocation5 + $0x198] sm:$0xff]
        %v801 = vld [vmem:[#allocation5 + $0x1a0] sm:$0xff]
        %v802 = vld [vmem:[#allocation5 + $0x1a8] sm:$0xff]
        %v803 = vld [vmem:[#allocation5 + $0x1b0] sm:$0xff]
        %v804 = vld [vmem:[#allocation5 + $0x1b8] sm:$0xff]
        %v805 = vld [vmem:[#allocation5 + $0x1c0] sm:$0xff]
        %v806 = vld [vmem:[#allocation5 + $0x1c8] sm:$0xff]
        %v807 = vld [vmem:[#allocation5 + $0x1d0] sm:$0xff]
        %v808 = vld [vmem:[#allocation5 + $0x1d8] sm:$0xff]
        %v809 = vld [vmem:[#allocation5 + $0x1e0] sm:$0xff]
        %v810 = vld [vmem:[#allocation5 + $0x1e8] sm:$0xff]
        %v811 = vld [vmem:[#allocation5 + $0x1f0] sm:$0xff]
        %v812 = vld [vmem:[#allocation5 + $0x1f8] sm:$0xff]
        %v813 = vld [vmem:[#allocation5 + $0x200] sm:$0xff]
        %v814 = vld [vmem:[#allocation5 + $0x208] sm:$0xff]
        %v815 = vld [vmem:[#allocation5 + $0x210] sm:$0xff]
        %v816 = vld [vmem:[#allocation5 + $0x218] sm:$0xff]
        %v817 = vld [vmem:[#allocation5 + $0x220] sm:$0xff]
        %v818 = vld [vmem:[#allocation5 + $0x228] sm:$0xff]
        %v819 = vld [vmem:[#allocation5 + $0x230] sm:$0xff]
        %v820 = vld [vmem:[#allocation5 + $0x238] sm:$0xff]
        %v821 = vld [vmem:[#allocation5 + $0x240] sm:$0xff]
        %v822 = vld [vmem:[#allocation5 + $0x248] sm:$0xff]
        %v823 = vld [vmem:[#allocation5 + $0x250] sm:$0xff]
        %v824 = vld [vmem:[#allocation5 + $0x258] sm:$0xff]
        %v825 = vld [vmem:[#allocation5 + $0x260] sm:$0xff]
        %v826 = vld [vmem:[#allocation5 + $0x268] sm:$0xff]
        %v827 = vld [vmem:[#allocation5 + $0x270] sm:$0xff]
        %v828 = vld [vmem:[#allocation5 + $0x278] sm:$0xff]
        %v829 = vld [vmem:[#allocation5 + $0x280] sm:$0xff]
        %v830 = vld [vmem:[#allocation5 + $0x288] sm:$0xff]
        %v831 = vld [vmem:[#allocation5 + $0x290] sm:$0xff]
        %v832 = vld [vmem:[#allocation5 + $0x298] sm:$0xff]
        %v833 = vld [vmem:[#allocation5 + $0x2a0] sm:$0xff]
        %v834 = vld [vmem:[#allocation5 + $0x2a8] sm:$0xff]
        %v835 = vld [vmem:[#allocation5 + $0x2b0] sm:$0xff]
        %v836 = vld [vmem:[#allocation5 + $0x2b8] sm:$0xff]
        %v837 = vld [vmem:[#allocation5 + $0x2c0] sm:$0xff]
        %v838 = vld [vmem:[#allocation5 + $0x2c8] sm:$0xff]
        %v839 = vld [vmem:[#allocation5 + $0x2d0] sm:$0xff]
        %v840 = vld [vmem:[#allocation5 + $0x2d8] sm:$0xff]
        %v841 = vld [vmem:[#allocation5 + $0x2e0] sm:$0xff]
        %v842 = vld [vmem:[#allocation5 + $0x2e8] sm:$0xff]
        %v843 = vld [vmem:[#allocation5 + $0x2f0] sm:$0xff]
        %v844 = vld [vmem:[#allocation5 + $0x2f8] sm:$0xff]
        %v845 = vld [vmem:[#allocation5 + $0x300] sm:$0xff]
        %v846 = vld [vmem:[#allocation5 + $0x308] sm:$0xff]
        %v847 = vld [vmem:[#allocation5 + $0x310] sm:$0xff]
        %v848 = vld [vmem:[#allocation5 + $0x318] sm:$0xff]
        %v849 = vld [vmem:[#allocation5 + $0x320] sm:$0xff]
        %v850 = vld [vmem:[#allocation5 + $0x328] sm:$0xff]
        %v851 = vld [vmem:[#allocation5 + $0x330] sm:$0xff]
        %v852 = vld [vmem:[#allocation5 + $0x338] sm:$0xff]
        %v853 = vld [vmem:[#allocation5 + $0x340] sm:$0xff]
        %v854 = vld [vmem:[#allocation5 + $0x348] sm:$0xff]
        %v855 = vld [vmem:[#allocation5 + $0x350] sm:$0xff]
        %v856 = vld [vmem:[#allocation5 + $0x358] sm:$0xff]
        %v857 = vld [vmem:[#allocation5 + $0x360] sm:$0xff]
        %v858 = vld [vmem:[#allocation5 + $0x368] sm:$0xff]
        %v859 = vld [vmem:[#allocation5 + $0x370] sm:$0xff]
        %v860 = vld [vmem:[#allocation5 + $0x378] sm:$0xff]
        %v861 = vld [vmem:[#allocation5 + $0x380] sm:$0xff]
        %v862 = vld [vmem:[#allocation5 + $0x388] sm:$0xff]
        %v863 = vld [vmem:[#allocation5 + $0x390] sm:$0xff]
        %v864 = vld [vmem:[#allocation5 + $0x398] sm:$0xff]
        %v865 = vld [vmem:[#allocation5 + $0x3a0] sm:$0xff]
        %v866 = vld [vmem:[#allocation5 + $0x3a8] sm:$0xff]
        %v867 = vld [vmem:[#allocation5 + $0x3b0] sm:$0xff]
        %v868 = vld [vmem:[#allocation5 + $0x3b8] sm:$0xff]
        %v869 = vld [vmem:[#allocation5 + $0x3c0] sm:$0xff]
        %v870 = vld [vmem:[#allocation5 + $0x3c8] sm:$0xff]
        %v871 = vld [vmem:[#allocation5 + $0x3d0] sm:$0xff]
        %v872 = vld [vmem:[#allocation5 + $0x3d8] sm:$0xff]
        %v873 = vld [vmem:[#allocation5 + $0x3e0] sm:$0xff]
        %v874 = vld [vmem:[#allocation5 + $0x3e8] sm:$0xff]
        %v875 = vld [vmem:[#allocation5 + $0x3f0] sm:$0xff]
        %v876 = vld [vmem:[#allocation5 + $0x3f8] sm:$0xff]
        %v877 = vld [vmem:[#allocation5 + $0x400] sm:$0xff]
        %v878 = vld [vmem:[#allocation5 + $0x408] sm:$0xff]
        %v879 = vld [vmem:[#allocation5 + $0x410] sm:$0xff]
        %v880 = vld [vmem:[#allocation5 + $0x418] sm:$0xff]
        %v881 = vld [vmem:[#allocation5 + $0x420] sm:$0xff]
        %v882 = vld [vmem:[#allocation5 + $0x428] sm:$0xff]
        %v883 = vld [vmem:[#allocation5 + $0x430] sm:$0xff]
        %v884 = vld [vmem:[#allocation5 + $0x438] sm:$0xff]
        %v885 = vld [vmem:[#allocation5 + $0x440] sm:$0xff]
        %v886 = vld [vmem:[#allocation5 + $0x448] sm:$0xff]
        %v887 = vld [vmem:[#allocation5 + $0x450] sm:$0xff]
        %v888 = vld [vmem:[#allocation5 + $0x458] sm:$0xff]
        %v889 = vld [vmem:[#allocation5 + $0x460] sm:$0xff]
        %v890 = vld [vmem:[#allocation5 + $0x468] sm:$0xff]
        %v891 = vld [vmem:[#allocation5 + $0x470] sm:$0xff]
        %v892 = vld [vmem:[#allocation5 + $0x478] sm:$0xff]
        %v893 = vld [vmem:[#allocation5 + $0x480] sm:$0xff]
        %v894 = vld [vmem:[#allocation5 + $0x488] sm:$0xff]
        %v895 = vld [vmem:[#allocation5 + $0x490] sm:$0xff]
        %v896 = vld [vmem:[#allocation5 + $0x498] sm:$0xff]
        %v897 = vld [vmem:[#allocation5 + $0x4a0] sm:$0xff]
        %v898 = vld [vmem:[#allocation5 + $0x4a8] sm:$0xff]
        %v899 = vld [vmem:[#allocation5 + $0x4b0] sm:$0xff]
        %v900 = vld [vmem:[#allocation5 + $0x4b8] sm:$0xff]
        %v901 = vld [vmem:[#allocation5 + $0x4c0] sm:$0xff]
        %v902 = vld [vmem:[#allocation5 + $0x4c8] sm:$0xff]
        %v903 = vld [vmem:[#allocation5 + $0x4d0] sm:$0xff]
        %v904 = vld [vmem:[#allocation5 + $0x4d8] sm:$0xff]
        %v905 = vld [vmem:[#allocation5 + $0x4e0] sm:$0xff]
        %v906 = vld [vmem:[#allocation5 + $0x4e8] sm:$0xff]
        %v907 = vld [vmem:[#allocation5 + $0x4f0] sm:$0xff]
        %v908 = vld [vmem:[#allocation5 + $0x4f8] sm:$0xff]
        %v909 = vld [vmem:[#allocation5 + $0x500] sm:$0xff]
        %v910 = vld [vmem:[#allocation5 + $0x508] sm:$0xff]
        %v911 = vld [vmem:[#allocation5 + $0x510] sm:$0xff]
        %v912 = vld [vmem:[#allocation5 + $0x518] sm:$0xff]
        %v913 = vld [vmem:[#allocation5 + $0x520] sm:$0xff]
        %v914 = vld [vmem:[#allocation5 + $0x528] sm:$0xff]
        %v915 = vld [vmem:[#allocation5 + $0x530] sm:$0xff]
        %v916 = vld [vmem:[#allocation5 + $0x538] sm:$0xff]
        %v917 = vld [vmem:[#allocation5 + $0x540] sm:$0xff]
        %v918 = vld [vmem:[#allocation5 + $0x548] sm:$0xff]
        %v919 = vld [vmem:[#allocation5 + $0x550] sm:$0xff]
        %v920 = vld [vmem:[#allocation5 + $0x558] sm:$0xff]
        %v921 = vld [vmem:[#allocation5 + $0x560] sm:$0xff]
        %v922 = vld [vmem:[#allocation5 + $0x568] sm:$0xff]
        %v923 = vld [vmem:[#allocation5 + $0x570] sm:$0xff]
        %v924 = vld [vmem:[#allocation5 + $0x578] sm:$0xff]
        %v925 = vld [vmem:[#allocation5 + $0x580] sm:$0xff]
        %v926 = vld [vmem:[#allocation5 + $0x588] sm:$0xff]
        %v927 = vld [vmem:[#allocation5 + $0x590] sm:$0xff]
        %v928 = vld [vmem:[#allocation5 + $0x598] sm:$0xff]
        %v929 = vld [vmem:[#allocation5 + $0x5a0] sm:$0xff]
        %v930 = vld [vmem:[#allocation5 + $0x5a8] sm:$0xff]
        %v931 = vld [vmem:[#allocation5 + $0x5b0] sm:$0xff]
        %v932 = vld [vmem:[#allocation5 + $0x5b8] sm:$0xff]
        %v933 = vld [vmem:[#allocation5 + $0x5c0] sm:$0xff]
        %v934 = vld [vmem:[#allocation5 + $0x5c8] sm:$0xff]
        %v935 = vld [vmem:[#allocation5 + $0x5d0] sm:$0xff]
        %v936 = vld [vmem:[#allocation5 + $0x5d8] sm:$0xff]
        %v937 = vld [vmem:[#allocation5 + $0x5e0] sm:$0xff]
        %v938 = vld [vmem:[#allocation5 + $0x5e8] sm:$0xff]
        %v939 = vld [vmem:[#allocation5 + $0x5f0] sm:$0xff]
        %v940 = vld [vmem:[#allocation5 + $0x5f8] sm:$0xff]
        %v941 = vld [vmem:[#allocation5 + $0x600] sm:$0xff]
        %v942 = vld [vmem:[#allocation5 + $0x608] sm:$0xff]
        %v943 = vld [vmem:[#allocation5 + $0x610] sm:$0xff]
        %v944 = vld [vmem:[#allocation5 + $0x618] sm:$0xff]
        %v945 = vld [vmem:[#allocation5 + $0x620] sm:$0xff]
        %v946 = vld [vmem:[#allocation5 + $0x628] sm:$0xff]
        %v947 = vld [vmem:[#allocation5 + $0x630] sm:$0xff]
        %v948 = vld [vmem:[#allocation5 + $0x638] sm:$0xff]
        %v949 = vld [vmem:[#allocation5 + $0x640] sm:$0xff]
        %v950 = vld [vmem:[#allocation5 + $0x648] sm:$0xff]
        %v951 = vld [vmem:[#allocation5 + $0x650] sm:$0xff]
        %v952 = vld [vmem:[#allocation5 + $0x658] sm:$0xff]
        %v953 = vld [vmem:[#allocation5 + $0x660] sm:$0xff]
        %v954 = vld [vmem:[#allocation5 + $0x668] sm:$0xff]
        %v955 = vld [vmem:[#allocation5 + $0x670] sm:$0xff]
        %v956 = vld [vmem:[#allocation5 + $0x678] sm:$0xff]
        %v957 = vld [vmem:[#allocation5 + $0x680] sm:$0xff]
        %v958 = vld [vmem:[#allocation5 + $0x688] sm:$0xff]
        %v959 = vld [vmem:[#allocation5 + $0x690] sm:$0xff]
        %v960 = vld [vmem:[#allocation5 + $0x698] sm:$0xff]
        %v961 = vld [vmem:[#allocation5 + $0x6a0] sm:$0xff]
        %v962 = vld [vmem:[#allocation5 + $0x6a8] sm:$0xff]
        %v963 = vld [vmem:[#allocation5 + $0x6b0] sm:$0xff]
        %v964 = vld [vmem:[#allocation5 + $0x6b8] sm:$0xff]
        %v965 = vld [vmem:[#allocation5 + $0x6c0] sm:$0xff]
        %v966 = vld [vmem:[#allocation5 + $0x6c8] sm:$0xff]
        %v967 = vld [vmem:[#allocation5 + $0x6d0] sm:$0xff]
        %v968 = vld [vmem:[#allocation5 + $0x6d8] sm:$0xff]
        %v969 = vld [vmem:[#allocation5 + $0x6e0] sm:$0xff]
        %v970 = vld [vmem:[#allocation5 + $0x6e8] sm:$0xff]
        %v971 = vld [vmem:[#allocation5 + $0x6f0] sm:$0xff]
        %v972 = vld [vmem:[#allocation5 + $0x6f8] sm:$0xff]
        %v973 = vld [vmem:[#allocation5 + $0x700] sm:$0xff]
        %v974 = vld [vmem:[#allocation5 + $0x708] sm:$0xff]
        %v975 = vld [vmem:[#allocation5 + $0x710] sm:$0xff]
        %v976 = vld [vmem:[#allocation5 + $0x718] sm:$0xff]
        %v977 = vld [vmem:[#allocation5 + $0x720] sm:$0xff]
        %v978 = vld [vmem:[#allocation5 + $0x728] sm:$0xff]
        %v979 = vld [vmem:[#allocation5 + $0x730] sm:$0xff]
        %v980 = vld [vmem:[#allocation5 + $0x738] sm:$0xff]
        %v981 = vld [vmem:[#allocation5 + $0x740] sm:$0xff]
        %v982 = vld [vmem:[#allocation5 + $0x748] sm:$0xff]
        %v983 = vld [vmem:[#allocation5 + $0x750] sm:$0xff]
        %v984 = vld [vmem:[#allocation5 + $0x758] sm:$0xff]
        %v985 = vld [vmem:[#allocation5 + $0x760] sm:$0xff]
        %v986 = vld [vmem:[#allocation5 + $0x768] sm:$0xff]
        %v987 = vld [vmem:[#allocation5 + $0x770] sm:$0xff]
        %v988 = vld [vmem:[#allocation5 + $0x778] sm:$0xff]
        %v989 = vld [vmem:[#allocation5 + $0x780] sm:$0xff]
        %v990 = vld [vmem:[#allocation5 + $0x788] sm:$0xff]
        %v991 = vld [vmem:[#allocation5 + $0x790] sm:$0xff]
        %v992 = vld [vmem:[#allocation5 + $0x798] sm:$0xff]
        %v993 = vld [vmem:[#allocation5 + $0x7a0] sm:$0xff]
        %v994 = vld [vmem:[#allocation5 + $0x7a8] sm:$0xff]
        %v995 = vld [vmem:[#allocation5 + $0x7b0] sm:$0xff]
        %v996 = vld [vmem:[#allocation5 + $0x7b8] sm:$0xff]
        %v997 = vld [vmem:[#allocation5 + $0x7c0] sm:$0xff]
        %v998 = vld [vmem:[#allocation5 + $0x7c8] sm:$0xff]
        %v999 = vld [vmem:[#allocation5 + $0x7d0] sm:$0xff]
        %v1000 = vld [vmem:[#allocation5 + $0x7d8] sm:$0xff]
        %v1001 = vld [vmem:[#allocation5 + $0x7e0] sm:$0xff]
        %v1002 = vld [vmem:[#allocation5 + $0x7e8] sm:$0xff]
        %v1003 = vld [vmem:[#allocation5 + $0x7f0] sm:$0xff]
        %v1004 = vld [vmem:[#allocation5 + $0x7f8] sm:$0xff]
        %v1005 = vld [vmem:[#allocation5 + $0x800] sm:$0x11]
        %v1006 = vld [vmem:[#allocation5 + $0x808] sm:$0x11]
        %v1007 = vunpack.c.l.bf16 %v1005
        %v1008 = vunpack.c.h.bf16 %v1005
        %v1009 = vunpack.c.l.bf16 %v1006
        %v1010 = vunpack.c.h.bf16 %v1006
        %v1011 = vlaneseq
        %v1012 = vshrl.u32 %v1011, 7
        %v1013 = vsub.s32 0, %v1012
        %v1014 = vrot.slane %v1007, %v1013
        %v1015 = vlaneseq
        %v1016 = vshrl.u32 %v1015, 7
        %v1017 = vsub.s32 0, %v1016
        %v1018 = vrot.slane %v1008, %v1017
        %v1019 = vlaneseq
        %v1020 = vshrl.u32 %v1019, 7
        %v1021 = vsub.s32 0, %v1020
        %v1022 = vrot.slane %v1009, %v1021
        %v1023 = vlaneseq
        %v1024 = vshrl.u32 %v1023, 7
        %v1025 = vsub.s32 0, %v1024
        %v1026 = vrot.slane %v1010, %v1025
        %v1283 = vunpack.c.l.b16 %v749
        %v1284 = vunpack.c.h.b16 %v749
        %v1285 = vunpack.c.l.b16 %v750
        %v1286 = vunpack.c.h.b16 %v750
        %v1287 = vunpack.c.l.b16 %v751
        %v1288 = vunpack.c.h.b16 %v751
        %v1289 = vunpack.c.l.b16 %v752
        %v1290 = vunpack.c.h.b16 %v752
        %v1291 = vunpack.c.l.b16 %v753
        %v1292 = vunpack.c.h.b16 %v753
        %v1293 = vunpack.c.l.b16 %v754
        %v1294 = vunpack.c.h.b16 %v754
        %v1295 = vunpack.c.l.b16 %v755
        %v1296 = vunpack.c.h.b16 %v755
        %v1297 = vunpack.c.l.b16 %v756
        %v1298 = vunpack.c.h.b16 %v756
        %v1299 = vunpack.c.l.b16 %v757
        %v1300 = vunpack.c.h.b16 %v757
        %v1301 = vunpack.c.l.b16 %v758
        %v1302 = vunpack.c.h.b16 %v758
        %v1303 = vunpack.c.l.b16 %v759
        %v1304 = vunpack.c.h.b16 %v759
        %v1305 = vunpack.c.l.b16 %v760
        %v1306 = vunpack.c.h.b16 %v760
        %v1307 = vunpack.c.l.b16 %v761
        %v1308 = vunpack.c.h.b16 %v761
        %v1309 = vunpack.c.l.b16 %v762
        %v1310 = vunpack.c.h.b16 %v762
        %v1311 = vunpack.c.l.b16 %v763
        %v1312 = vunpack.c.h.b16 %v763
        %v1313 = vunpack.c.l.b16 %v764
        %v1314 = vunpack.c.h.b16 %v764
        %v1315 = vunpack.c.l.b16 %v765
        %v1316 = vunpack.c.h.b16 %v765
        %v1317 = vunpack.c.l.b16 %v766
        %v1318 = vunpack.c.h.b16 %v766
        %v1319 = vunpack.c.l.b16 %v767
        %v1320 = vunpack.c.h.b16 %v767
        %v1321 = vunpack.c.l.b16 %v768
        %v1322 = vunpack.c.h.b16 %v768
        %v1323 = vunpack.c.l.b16 %v769
        %v1324 = vunpack.c.h.b16 %v769
        %v1325 = vunpack.c.l.b16 %v770
        %v1326 = vunpack.c.h.b16 %v770
        %v1327 = vunpack.c.l.b16 %v771
        %v1328 = vunpack.c.h.b16 %v771
        %v1329 = vunpack.c.l.b16 %v772
        %v1330 = vunpack.c.h.b16 %v772
        %v1331 = vunpack.c.l.b16 %v773
        %v1332 = vunpack.c.h.b16 %v773
        %v1333 = vunpack.c.l.b16 %v774
        %v1334 = vunpack.c.h.b16 %v774
        %v1335 = vunpack.c.l.b16 %v775
        %v1336 = vunpack.c.h.b16 %v775
        %v1337 = vunpack.c.l.b16 %v776
        %v1338 = vunpack.c.h.b16 %v776
        %v1339 = vunpack.c.l.b16 %v777
        %v1340 = vunpack.c.h.b16 %v777
        %v1341 = vunpack.c.l.b16 %v778
        %v1342 = vunpack.c.h.b16 %v778
        %v1343 = vunpack.c.l.b16 %v779
        %v1344 = vunpack.c.h.b16 %v779
        %v1345 = vunpack.c.l.b16 %v780
        %v1346 = vunpack.c.h.b16 %v780
        %v1347 = vunpack.c.l.b16 %v781
        %v1348 = vunpack.c.h.b16 %v781
        %v1349 = vunpack.c.l.b16 %v782
        %v1350 = vunpack.c.h.b16 %v782
        %v1351 = vunpack.c.l.b16 %v783
        %v1352 = vunpack.c.h.b16 %v783
        %v1353 = vunpack.c.l.b16 %v784
        %v1354 = vunpack.c.h.b16 %v784
        %v1355 = vunpack.c.l.b16 %v785
        %v1356 = vunpack.c.h.b16 %v785
        %v1357 = vunpack.c.l.b16 %v786
        %v1358 = vunpack.c.h.b16 %v786
        %v1359 = vunpack.c.l.b16 %v787
        %v1360 = vunpack.c.h.b16 %v787
        %v1361 = vunpack.c.l.b16 %v788
        %v1362 = vunpack.c.h.b16 %v788
        %v1363 = vunpack.c.l.b16 %v789
        %v1364 = vunpack.c.h.b16 %v789
        %v1365 = vunpack.c.l.b16 %v790
        %v1366 = vunpack.c.h.b16 %v790
        %v1367 = vunpack.c.l.b16 %v791
        %v1368 = vunpack.c.h.b16 %v791
        %v1369 = vunpack.c.l.b16 %v792
        %v1370 = vunpack.c.h.b16 %v792
        %v1371 = vunpack.c.l.b16 %v793
        %v1372 = vunpack.c.h.b16 %v793
        %v1373 = vunpack.c.l.b16 %v794
        %v1374 = vunpack.c.h.b16 %v794
        %v1375 = vunpack.c.l.b16 %v795
        %v1376 = vunpack.c.h.b16 %v795
        %v1377 = vunpack.c.l.b16 %v796
        %v1378 = vunpack.c.h.b16 %v796
        %v1379 = vunpack.c.l.b16 %v797
        %v1380 = vunpack.c.h.b16 %v797
        %v1381 = vunpack.c.l.b16 %v798
        %v1382 = vunpack.c.h.b16 %v798
        %v1383 = vunpack.c.l.b16 %v799
        %v1384 = vunpack.c.h.b16 %v799
        %v1385 = vunpack.c.l.b16 %v800
        %v1386 = vunpack.c.h.b16 %v800
        %v1387 = vunpack.c.l.b16 %v801
        %v1388 = vunpack.c.h.b16 %v801
        %v1389 = vunpack.c.l.b16 %v802
        %v1390 = vunpack.c.h.b16 %v802
        %v1391 = vunpack.c.l.b16 %v803
        %v1392 = vunpack.c.h.b16 %v803
        %v1393 = vunpack.c.l.b16 %v804
        %v1394 = vunpack.c.h.b16 %v804
        %v1395 = vunpack.c.l.b16 %v805
        %v1396 = vunpack.c.h.b16 %v805
        %v1397 = vunpack.c.l.b16 %v806
        %v1398 = vunpack.c.h.b16 %v806
        %v1399 = vunpack.c.l.b16 %v807
        %v1400 = vunpack.c.h.b16 %v807
        %v1401 = vunpack.c.l.b16 %v808
        %v1402 = vunpack.c.h.b16 %v808
        %v1403 = vunpack.c.l.b16 %v809
        %v1404 = vunpack.c.h.b16 %v809
        %v1405 = vunpack.c.l.b16 %v810
        %v1406 = vunpack.c.h.b16 %v810
        %v1407 = vunpack.c.l.b16 %v811
        %v1408 = vunpack.c.h.b16 %v811
        %v1409 = vunpack.c.l.b16 %v812
        %v1410 = vunpack.c.h.b16 %v812
        %v1411 = vunpack.c.l.b16 %v813
        %v1412 = vunpack.c.h.b16 %v813
        %v1413 = vunpack.c.l.b16 %v814
        %v1414 = vunpack.c.h.b16 %v814
        %v1415 = vunpack.c.l.b16 %v815
        %v1416 = vunpack.c.h.b16 %v815
        %v1417 = vunpack.c.l.b16 %v816
        %v1418 = vunpack.c.h.b16 %v816
        %v1419 = vunpack.c.l.b16 %v817
        %v1420 = vunpack.c.h.b16 %v817
        %v1421 = vunpack.c.l.b16 %v818
        %v1422 = vunpack.c.h.b16 %v818
        %v1423 = vunpack.c.l.b16 %v819
        %v1424 = vunpack.c.h.b16 %v819
        %v1425 = vunpack.c.l.b16 %v820
        %v1426 = vunpack.c.h.b16 %v820
        %v1427 = vunpack.c.l.b16 %v821
        %v1428 = vunpack.c.h.b16 %v821
        %v1429 = vunpack.c.l.b16 %v822
        %v1430 = vunpack.c.h.b16 %v822
        %v1431 = vunpack.c.l.b16 %v823
        %v1432 = vunpack.c.h.b16 %v823
        %v1433 = vunpack.c.l.b16 %v824
        %v1434 = vunpack.c.h.b16 %v824
        %v1435 = vunpack.c.l.b16 %v825
        %v1436 = vunpack.c.h.b16 %v825
        %v1437 = vunpack.c.l.b16 %v826
        %v1438 = vunpack.c.h.b16 %v826
        %v1439 = vunpack.c.l.b16 %v827
        %v1440 = vunpack.c.h.b16 %v827
        %v1441 = vunpack.c.l.b16 %v828
        %v1442 = vunpack.c.h.b16 %v828
        %v1443 = vunpack.c.l.b16 %v829
        %v1444 = vunpack.c.h.b16 %v829
        %v1445 = vunpack.c.l.b16 %v830
        %v1446 = vunpack.c.h.b16 %v830
        %v1447 = vunpack.c.l.b16 %v831
        %v1448 = vunpack.c.h.b16 %v831
        %v1449 = vunpack.c.l.b16 %v832
        %v1450 = vunpack.c.h.b16 %v832
        %v1451 = vunpack.c.l.b16 %v833
        %v1452 = vunpack.c.h.b16 %v833
        %v1453 = vunpack.c.l.b16 %v834
        %v1454 = vunpack.c.h.b16 %v834
        %v1455 = vunpack.c.l.b16 %v835
        %v1456 = vunpack.c.h.b16 %v835
        %v1457 = vunpack.c.l.b16 %v836
        %v1458 = vunpack.c.h.b16 %v836
        %v1459 = vunpack.c.l.b16 %v837
        %v1460 = vunpack.c.h.b16 %v837
        %v1461 = vunpack.c.l.b16 %v838
        %v1462 = vunpack.c.h.b16 %v838
        %v1463 = vunpack.c.l.b16 %v839
        %v1464 = vunpack.c.h.b16 %v839
        %v1465 = vunpack.c.l.b16 %v840
        %v1466 = vunpack.c.h.b16 %v840
        %v1467 = vunpack.c.l.b16 %v841
        %v1468 = vunpack.c.h.b16 %v841
        %v1469 = vunpack.c.l.b16 %v842
        %v1470 = vunpack.c.h.b16 %v842
        %v1471 = vunpack.c.l.b16 %v843
        %v1472 = vunpack.c.h.b16 %v843
        %v1473 = vunpack.c.l.b16 %v844
        %v1474 = vunpack.c.h.b16 %v844
        %v1475 = vunpack.c.l.b16 %v845
        %v1476 = vunpack.c.h.b16 %v845
        %v1477 = vunpack.c.l.b16 %v846
        %v1478 = vunpack.c.h.b16 %v846
        %v1479 = vunpack.c.l.b16 %v847
        %v1480 = vunpack.c.h.b16 %v847
        %v1481 = vunpack.c.l.b16 %v848
        %v1482 = vunpack.c.h.b16 %v848
        %v1483 = vunpack.c.l.b16 %v849
        %v1484 = vunpack.c.h.b16 %v849
        %v1485 = vunpack.c.l.b16 %v850
        %v1486 = vunpack.c.h.b16 %v850
        %v1487 = vunpack.c.l.b16 %v851
        %v1488 = vunpack.c.h.b16 %v851
        %v1489 = vunpack.c.l.b16 %v852
        %v1490 = vunpack.c.h.b16 %v852
        %v1491 = vunpack.c.l.b16 %v853
        %v1492 = vunpack.c.h.b16 %v853
        %v1493 = vunpack.c.l.b16 %v854
        %v1494 = vunpack.c.h.b16 %v854
        %v1495 = vunpack.c.l.b16 %v855
        %v1496 = vunpack.c.h.b16 %v855
        %v1497 = vunpack.c.l.b16 %v856
        %v1498 = vunpack.c.h.b16 %v856
        %v1499 = vunpack.c.l.b16 %v857
        %v1500 = vunpack.c.h.b16 %v857
        %v1501 = vunpack.c.l.b16 %v858
        %v1502 = vunpack.c.h.b16 %v858
        %v1503 = vunpack.c.l.b16 %v859
        %v1504 = vunpack.c.h.b16 %v859
        %v1505 = vunpack.c.l.b16 %v860
        %v1506 = vunpack.c.h.b16 %v860
        %v1507 = vunpack.c.l.b16 %v861
        %v1508 = vunpack.c.h.b16 %v861
        %v1509 = vunpack.c.l.b16 %v862
        %v1510 = vunpack.c.h.b16 %v862
        %v1511 = vunpack.c.l.b16 %v863
        %v1512 = vunpack.c.h.b16 %v863
        %v1513 = vunpack.c.l.b16 %v864
        %v1514 = vunpack.c.h.b16 %v864
        %v1515 = vunpack.c.l.b16 %v865
        %v1516 = vunpack.c.h.b16 %v865
        %v1517 = vunpack.c.l.b16 %v866
        %v1518 = vunpack.c.h.b16 %v866
        %v1519 = vunpack.c.l.b16 %v867
        %v1520 = vunpack.c.h.b16 %v867
        %v1521 = vunpack.c.l.b16 %v868
        %v1522 = vunpack.c.h.b16 %v868
        %v1523 = vunpack.c.l.b16 %v869
        %v1524 = vunpack.c.h.b16 %v869
        %v1525 = vunpack.c.l.b16 %v870
        %v1526 = vunpack.c.h.b16 %v870
        %v1527 = vunpack.c.l.b16 %v871
        %v1528 = vunpack.c.h.b16 %v871
        %v1529 = vunpack.c.l.b16 %v872
        %v1530 = vunpack.c.h.b16 %v872
        %v1531 = vunpack.c.l.b16 %v873
        %v1532 = vunpack.c.h.b16 %v873
        %v1533 = vunpack.c.l.b16 %v874
        %v1534 = vunpack.c.h.b16 %v874
        %v1535 = vunpack.c.l.b16 %v875
        %v1536 = vunpack.c.h.b16 %v875
        %v1537 = vunpack.c.l.b16 %v876
        %v1538 = vunpack.c.h.b16 %v876
        %v1539 = vunpack.c.l.b16 %v877
        %v1540 = vunpack.c.h.b16 %v877
        %v1541 = vunpack.c.l.b16 %v878
        %v1542 = vunpack.c.h.b16 %v878
        %v1543 = vunpack.c.l.b16 %v879
        %v1544 = vunpack.c.h.b16 %v879
        %v1545 = vunpack.c.l.b16 %v880
        %v1546 = vunpack.c.h.b16 %v880
        %v1547 = vunpack.c.l.b16 %v881
        %v1548 = vunpack.c.h.b16 %v881
        %v1549 = vunpack.c.l.b16 %v882
        %v1550 = vunpack.c.h.b16 %v882
        %v1551 = vunpack.c.l.b16 %v883
        %v1552 = vunpack.c.h.b16 %v883
        %v1553 = vunpack.c.l.b16 %v884
        %v1554 = vunpack.c.h.b16 %v884
        %v1555 = vunpack.c.l.b16 %v885
        %v1556 = vunpack.c.h.b16 %v885
        %v1557 = vunpack.c.l.b16 %v886
        %v1558 = vunpack.c.h.b16 %v886
        %v1559 = vunpack.c.l.b16 %v887
        %v1560 = vunpack.c.h.b16 %v887
        %v1561 = vunpack.c.l.b16 %v888
        %v1562 = vunpack.c.h.b16 %v888
        %v1563 = vunpack.c.l.b16 %v889
        %v1564 = vunpack.c.h.b16 %v889
        %v1565 = vunpack.c.l.b16 %v890
        %v1566 = vunpack.c.h.b16 %v890
        %v1567 = vunpack.c.l.b16 %v891
        %v1568 = vunpack.c.h.b16 %v891
        %v1569 = vunpack.c.l.b16 %v892
        %v1570 = vunpack.c.h.b16 %v892
        %v1571 = vunpack.c.l.b16 %v893
        %v1572 = vunpack.c.h.b16 %v893
        %v1573 = vunpack.c.l.b16 %v894
        %v1574 = vunpack.c.h.b16 %v894
        %v1575 = vunpack.c.l.b16 %v895
        %v1576 = vunpack.c.h.b16 %v895
        %v1577 = vunpack.c.l.b16 %v896
        %v1578 = vunpack.c.h.b16 %v896
        %v1579 = vunpack.c.l.b16 %v897
        %v1580 = vunpack.c.h.b16 %v897
        %v1581 = vunpack.c.l.b16 %v898
        %v1582 = vunpack.c.h.b16 %v898
        %v1583 = vunpack.c.l.b16 %v899
        %v1584 = vunpack.c.h.b16 %v899
        %v1585 = vunpack.c.l.b16 %v900
        %v1586 = vunpack.c.h.b16 %v900
        %v1587 = vunpack.c.l.b16 %v901
        %v1588 = vunpack.c.h.b16 %v901
        %v1589 = vunpack.c.l.b16 %v902
        %v1590 = vunpack.c.h.b16 %v902
        %v1591 = vunpack.c.l.b16 %v903
        %v1592 = vunpack.c.h.b16 %v903
        %v1593 = vunpack.c.l.b16 %v904
        %v1594 = vunpack.c.h.b16 %v904
        %v1595 = vunpack.c.l.b16 %v905
        %v1596 = vunpack.c.h.b16 %v905
        %v1597 = vunpack.c.l.b16 %v906
        %v1598 = vunpack.c.h.b16 %v906
        %v1599 = vunpack.c.l.b16 %v907
        %v1600 = vunpack.c.h.b16 %v907
        %v1601 = vunpack.c.l.b16 %v908
        %v1602 = vunpack.c.h.b16 %v908
        %v1603 = vunpack.c.l.b16 %v909
        %v1604 = vunpack.c.h.b16 %v909
        %v1605 = vunpack.c.l.b16 %v910
        %v1606 = vunpack.c.h.b16 %v910
        %v1607 = vunpack.c.l.b16 %v911
        %v1608 = vunpack.c.h.b16 %v911
        %v1609 = vunpack.c.l.b16 %v912
        %v1610 = vunpack.c.h.b16 %v912
        %v1611 = vunpack.c.l.b16 %v913
        %v1612 = vunpack.c.h.b16 %v913
        %v1613 = vunpack.c.l.b16 %v914
        %v1614 = vunpack.c.h.b16 %v914
        %v1615 = vunpack.c.l.b16 %v915
        %v1616 = vunpack.c.h.b16 %v915
        %v1617 = vunpack.c.l.b16 %v916
        %v1618 = vunpack.c.h.b16 %v916
        %v1619 = vunpack.c.l.b16 %v917
        %v1620 = vunpack.c.h.b16 %v917
        %v1621 = vunpack.c.l.b16 %v918
        %v1622 = vunpack.c.h.b16 %v918
        %v1623 = vunpack.c.l.b16 %v919
        %v1624 = vunpack.c.h.b16 %v919
        %v1625 = vunpack.c.l.b16 %v920
        %v1626 = vunpack.c.h.b16 %v920
        %v1627 = vunpack.c.l.b16 %v921
        %v1628 = vunpack.c.h.b16 %v921
        %v1629 = vunpack.c.l.b16 %v922
        %v1630 = vunpack.c.h.b16 %v922
        %v1631 = vunpack.c.l.b16 %v923
        %v1632 = vunpack.c.h.b16 %v923
        %v1633 = vunpack.c.l.b16 %v924
        %v1634 = vunpack.c.h.b16 %v924
        %v1635 = vunpack.c.l.b16 %v925
        %v1636 = vunpack.c.h.b16 %v925
        %v1637 = vunpack.c.l.b16 %v926
        %v1638 = vunpack.c.h.b16 %v926
        %v1639 = vunpack.c.l.b16 %v927
        %v1640 = vunpack.c.h.b16 %v927
        %v1641 = vunpack.c.l.b16 %v928
        %v1642 = vunpack.c.h.b16 %v928
        %v1643 = vunpack.c.l.b16 %v929
        %v1644 = vunpack.c.h.b16 %v929
        %v1645 = vunpack.c.l.b16 %v930
        %v1646 = vunpack.c.h.b16 %v930
        %v1647 = vunpack.c.l.b16 %v931
        %v1648 = vunpack.c.h.b16 %v931
        %v1649 = vunpack.c.l.b16 %v932
        %v1650 = vunpack.c.h.b16 %v932
        %v1651 = vunpack.c.l.b16 %v933
        %v1652 = vunpack.c.h.b16 %v933
        %v1653 = vunpack.c.l.b16 %v934
        %v1654 = vunpack.c.h.b16 %v934
        %v1655 = vunpack.c.l.b16 %v935
        %v1656 = vunpack.c.h.b16 %v935
        %v1657 = vunpack.c.l.b16 %v936
        %v1658 = vunpack.c.h.b16 %v936
        %v1659 = vunpack.c.l.b16 %v937
        %v1660 = vunpack.c.h.b16 %v937
        %v1661 = vunpack.c.l.b16 %v938
        %v1662 = vunpack.c.h.b16 %v938
        %v1663 = vunpack.c.l.b16 %v939
        %v1664 = vunpack.c.h.b16 %v939
        %v1665 = vunpack.c.l.b16 %v940
        %v1666 = vunpack.c.h.b16 %v940
        %v1667 = vunpack.c.l.b16 %v941
        %v1668 = vunpack.c.h.b16 %v941
        %v1669 = vunpack.c.l.b16 %v942
        %v1670 = vunpack.c.h.b16 %v942
        %v1671 = vunpack.c.l.b16 %v943
        %v1672 = vunpack.c.h.b16 %v943
        %v1673 = vunpack.c.l.b16 %v944
        %v1674 = vunpack.c.h.b16 %v944
        %v1675 = vunpack.c.l.b16 %v945
        %v1676 = vunpack.c.h.b16 %v945
        %v1677 = vunpack.c.l.b16 %v946
        %v1678 = vunpack.c.h.b16 %v946
        %v1679 = vunpack.c.l.b16 %v947
        %v1680 = vunpack.c.h.b16 %v947
        %v1681 = vunpack.c.l.b16 %v948
        %v1682 = vunpack.c.h.b16 %v948
        %v1683 = vunpack.c.l.b16 %v949
        %v1684 = vunpack.c.h.b16 %v949
        %v1685 = vunpack.c.l.b16 %v950
        %v1686 = vunpack.c.h.b16 %v950
        %v1687 = vunpack.c.l.b16 %v951
        %v1688 = vunpack.c.h.b16 %v951
        %v1689 = vunpack.c.l.b16 %v952
        %v1690 = vunpack.c.h.b16 %v952
        %v1691 = vunpack.c.l.b16 %v953
        %v1692 = vunpack.c.h.b16 %v953
        %v1693 = vunpack.c.l.b16 %v954
        %v1694 = vunpack.c.h.b16 %v954
        %v1695 = vunpack.c.l.b16 %v955
        %v1696 = vunpack.c.h.b16 %v955
        %v1697 = vunpack.c.l.b16 %v956
        %v1698 = vunpack.c.h.b16 %v956
        %v1699 = vunpack.c.l.b16 %v957
        %v1700 = vunpack.c.h.b16 %v957
        %v1701 = vunpack.c.l.b16 %v958
        %v1702 = vunpack.c.h.b16 %v958
        %v1703 = vunpack.c.l.b16 %v959
        %v1704 = vunpack.c.h.b16 %v959
        %v1705 = vunpack.c.l.b16 %v960
        %v1706 = vunpack.c.h.b16 %v960
        %v1707 = vunpack.c.l.b16 %v961
        %v1708 = vunpack.c.h.b16 %v961
        %v1709 = vunpack.c.l.b16 %v962
        %v1710 = vunpack.c.h.b16 %v962
        %v1711 = vunpack.c.l.b16 %v963
        %v1712 = vunpack.c.h.b16 %v963
        %v1713 = vunpack.c.l.b16 %v964
        %v1714 = vunpack.c.h.b16 %v964
        %v1715 = vunpack.c.l.b16 %v965
        %v1716 = vunpack.c.h.b16 %v965
        %v1717 = vunpack.c.l.b16 %v966
        %v1718 = vunpack.c.h.b16 %v966
        %v1719 = vunpack.c.l.b16 %v967
        %v1720 = vunpack.c.h.b16 %v967
        %v1721 = vunpack.c.l.b16 %v968
        %v1722 = vunpack.c.h.b16 %v968
        %v1723 = vunpack.c.l.b16 %v969
        %v1724 = vunpack.c.h.b16 %v969
        %v1725 = vunpack.c.l.b16 %v970
        %v1726 = vunpack.c.h.b16 %v970
        %v1727 = vunpack.c.l.b16 %v971
        %v1728 = vunpack.c.h.b16 %v971
        %v1729 = vunpack.c.l.b16 %v972
        %v1730 = vunpack.c.h.b16 %v972
        %v1731 = vunpack.c.l.b16 %v973
        %v1732 = vunpack.c.h.b16 %v973
        %v1733 = vunpack.c.l.b16 %v974
        %v1734 = vunpack.c.h.b16 %v974
        %v1735 = vunpack.c.l.b16 %v975
        %v1736 = vunpack.c.h.b16 %v975
        %v1737 = vunpack.c.l.b16 %v976
        %v1738 = vunpack.c.h.b16 %v976
        %v1739 = vunpack.c.l.b16 %v977
        %v1740 = vunpack.c.h.b16 %v977
        %v1741 = vunpack.c.l.b16 %v978
        %v1742 = vunpack.c.h.b16 %v978
        %v1743 = vunpack.c.l.b16 %v979
        %v1744 = vunpack.c.h.b16 %v979
        %v1745 = vunpack.c.l.b16 %v980
        %v1746 = vunpack.c.h.b16 %v980
        %v1747 = vunpack.c.l.b16 %v981
        %v1748 = vunpack.c.h.b16 %v981
        %v1749 = vunpack.c.l.b16 %v982
        %v1750 = vunpack.c.h.b16 %v982
        %v1751 = vunpack.c.l.b16 %v983
        %v1752 = vunpack.c.h.b16 %v983
        %v1753 = vunpack.c.l.b16 %v984
        %v1754 = vunpack.c.h.b16 %v984
        %v1755 = vunpack.c.l.b16 %v985
        %v1756 = vunpack.c.h.b16 %v985
        %v1757 = vunpack.c.l.b16 %v986
        %v1758 = vunpack.c.h.b16 %v986
        %v1759 = vunpack.c.l.b16 %v987
        %v1760 = vunpack.c.h.b16 %v987
        %v1761 = vunpack.c.l.b16 %v988
        %v1762 = vunpack.c.h.b16 %v988
        %v1763 = vunpack.c.l.b16 %v989
        %v1764 = vunpack.c.h.b16 %v989
        %v1765 = vunpack.c.l.b16 %v990
        %v1766 = vunpack.c.h.b16 %v990
        %v1767 = vunpack.c.l.b16 %v991
        %v1768 = vunpack.c.h.b16 %v991
        %v1769 = vunpack.c.l.b16 %v992
        %v1770 = vunpack.c.h.b16 %v992
        %v1771 = vunpack.c.l.b16 %v993
        %v1772 = vunpack.c.h.b16 %v993
        %v1773 = vunpack.c.l.b16 %v994
        %v1774 = vunpack.c.h.b16 %v994
        %v1775 = vunpack.c.l.b16 %v995
        %v1776 = vunpack.c.h.b16 %v995
        %v1777 = vunpack.c.l.b16 %v996
        %v1778 = vunpack.c.h.b16 %v996
        %v1779 = vunpack.c.l.b16 %v997
        %v1780 = vunpack.c.h.b16 %v997
        %v1781 = vunpack.c.l.b16 %v998
        %v1782 = vunpack.c.h.b16 %v998
        %v1783 = vunpack.c.l.b16 %v999
        %v1784 = vunpack.c.h.b16 %v999
        %v1785 = vunpack.c.l.b16 %v1000
        %v1786 = vunpack.c.h.b16 %v1000
        %v1787 = vunpack.c.l.b16 %v1001
        %v1788 = vunpack.c.h.b16 %v1001
        %v1789 = vunpack.c.l.b16 %v1002
        %v1790 = vunpack.c.h.b16 %v1002
        %v1791 = vunpack.c.l.b16 %v1003
        %v1792 = vunpack.c.h.b16 %v1003
        %v1793 = vunpack.c.l.b16 %v1004
        %v1794 = vunpack.c.h.b16 %v1004
        %v1795 = vpack.c.b16 %v1287, %v1283
        %v1796 = vpack.c.b16 %v1288, %v1284
        %v1797 = vpack.c.b16 %v1289, %v1285
        %v1798 = vpack.c.b16 %v1290, %v1286
        %v1799 = vpack.c.b16 %v1295, %v1291
        %v1800 = vpack.c.b16 %v1296, %v1292
        %v1801 = vpack.c.b16 %v1297, %v1293
        %v1802 = vpack.c.b16 %v1298, %v1294
        %v1803 = vpack.c.b16 %v1303, %v1299
        %v1804 = vpack.c.b16 %v1304, %v1300
        %v1805 = vpack.c.b16 %v1305, %v1301
        %v1806 = vpack.c.b16 %v1306, %v1302
        %v1807 = vpack.c.b16 %v1311, %v1307
        %v1808 = vpack.c.b16 %v1312, %v1308
        %v1809 = vpack.c.b16 %v1313, %v1309
        %v1810 = vpack.c.b16 %v1314, %v1310
        %v1811 = vpack.c.b16 %v1319, %v1315
        %v1812 = vpack.c.b16 %v1320, %v1316
        %v1813 = vpack.c.b16 %v1321, %v1317
        %v1814 = vpack.c.b16 %v1322, %v1318
        %v1815 = vpack.c.b16 %v1327, %v1323
        %v1816 = vpack.c.b16 %v1328, %v1324
        %v1817 = vpack.c.b16 %v1329, %v1325
        %v1818 = vpack.c.b16 %v1330, %v1326
        %v1819 = vpack.c.b16 %v1335, %v1331
        %v1820 = vpack.c.b16 %v1336, %v1332
        %v1821 = vpack.c.b16 %v1337, %v1333
        %v1822 = vpack.c.b16 %v1338, %v1334
        %v1823 = vpack.c.b16 %v1343, %v1339
        %v1824 = vpack.c.b16 %v1344, %v1340
        %v1825 = vpack.c.b16 %v1345, %v1341
        %v1826 = vpack.c.b16 %v1346, %v1342
        %v1827 = vpack.c.b16 %v1351, %v1347
        %v1828 = vpack.c.b16 %v1352, %v1348
        %v1829 = vpack.c.b16 %v1353, %v1349
        %v1830 = vpack.c.b16 %v1354, %v1350
        %v1831 = vpack.c.b16 %v1359, %v1355
        %v1832 = vpack.c.b16 %v1360, %v1356
        %v1833 = vpack.c.b16 %v1361, %v1357
        %v1834 = vpack.c.b16 %v1362, %v1358
        %v1835 = vpack.c.b16 %v1367, %v1363
        %v1836 = vpack.c.b16 %v1368, %v1364
        %v1837 = vpack.c.b16 %v1369, %v1365
        %v1838 = vpack.c.b16 %v1370, %v1366
        %v1839 = vpack.c.b16 %v1375, %v1371
        %v1840 = vpack.c.b16 %v1376, %v1372
        %v1841 = vpack.c.b16 %v1377, %v1373
        %v1842 = vpack.c.b16 %v1378, %v1374
        %v1843 = vpack.c.b16 %v1383, %v1379
        %v1844 = vpack.c.b16 %v1384, %v1380
        %v1845 = vpack.c.b16 %v1385, %v1381
        %v1846 = vpack.c.b16 %v1386, %v1382
        %v1847 = vpack.c.b16 %v1391, %v1387
        %v1848 = vpack.c.b16 %v1392, %v1388
        %v1849 = vpack.c.b16 %v1393, %v1389
        %v1850 = vpack.c.b16 %v1394, %v1390
        %v1851 = vpack.c.b16 %v1399, %v1395
        %v1852 = vpack.c.b16 %v1400, %v1396
        %v1853 = vpack.c.b16 %v1401, %v1397
        %v1854 = vpack.c.b16 %v1402, %v1398
        %v1855 = vpack.c.b16 %v1407, %v1403
        %v1856 = vpack.c.b16 %v1408, %v1404
        %v1857 = vpack.c.b16 %v1409, %v1405
        %v1858 = vpack.c.b16 %v1410, %v1406
        %v1859 = vpack.c.b16 %v1415, %v1411
        %v1860 = vpack.c.b16 %v1416, %v1412
        %v1861 = vpack.c.b16 %v1417, %v1413
        %v1862 = vpack.c.b16 %v1418, %v1414
        %v1863 = vpack.c.b16 %v1423, %v1419
        %v1864 = vpack.c.b16 %v1424, %v1420
        %v1865 = vpack.c.b16 %v1425, %v1421
        %v1866 = vpack.c.b16 %v1426, %v1422
        %v1867 = vpack.c.b16 %v1431, %v1427
        %v1868 = vpack.c.b16 %v1432, %v1428
        %v1869 = vpack.c.b16 %v1433, %v1429
        %v1870 = vpack.c.b16 %v1434, %v1430
        %v1871 = vpack.c.b16 %v1439, %v1435
        %v1872 = vpack.c.b16 %v1440, %v1436
        %v1873 = vpack.c.b16 %v1441, %v1437
        %v1874 = vpack.c.b16 %v1442, %v1438
        %v1875 = vpack.c.b16 %v1447, %v1443
        %v1876 = vpack.c.b16 %v1448, %v1444
        %v1877 = vpack.c.b16 %v1449, %v1445
        %v1878 = vpack.c.b16 %v1450, %v1446
        %v1879 = vpack.c.b16 %v1455, %v1451
        %v1880 = vpack.c.b16 %v1456, %v1452
        %v1881 = vpack.c.b16 %v1457, %v1453
        %v1882 = vpack.c.b16 %v1458, %v1454
        %v1883 = vpack.c.b16 %v1463, %v1459
        %v1884 = vpack.c.b16 %v1464, %v1460
        %v1885 = vpack.c.b16 %v1465, %v1461
        %v1886 = vpack.c.b16 %v1466, %v1462
        %v1887 = vpack.c.b16 %v1471, %v1467
        %v1888 = vpack.c.b16 %v1472, %v1468
        %v1889 = vpack.c.b16 %v1473, %v1469
        %v1890 = vpack.c.b16 %v1474, %v1470
        %v1891 = vpack.c.b16 %v1479, %v1475
        %v1892 = vpack.c.b16 %v1480, %v1476
        %v1893 = vpack.c.b16 %v1481, %v1477
        %v1894 = vpack.c.b16 %v1482, %v1478
        %v1895 = vpack.c.b16 %v1487, %v1483
        %v1896 = vpack.c.b16 %v1488, %v1484
        %v1897 = vpack.c.b16 %v1489, %v1485
        %v1898 = vpack.c.b16 %v1490, %v1486
        %v1899 = vpack.c.b16 %v1495, %v1491
        %v1900 = vpack.c.b16 %v1496, %v1492
        %v1901 = vpack.c.b16 %v1497, %v1493
        %v1902 = vpack.c.b16 %v1498, %v1494
        %v1903 = vpack.c.b16 %v1503, %v1499
        %v1904 = vpack.c.b16 %v1504, %v1500
        %v1905 = vpack.c.b16 %v1505, %v1501
        %v1906 = vpack.c.b16 %v1506, %v1502
        %v1907 = vpack.c.b16 %v1511, %v1507
        %v1908 = vpack.c.b16 %v1512, %v1508
        %v1909 = vpack.c.b16 %v1513, %v1509
        %v1910 = vpack.c.b16 %v1514, %v1510
        %v1911 = vpack.c.b16 %v1519, %v1515
        %v1912 = vpack.c.b16 %v1520, %v1516
        %v1913 = vpack.c.b16 %v1521, %v1517
        %v1914 = vpack.c.b16 %v1522, %v1518
        %v1915 = vpack.c.b16 %v1527, %v1523
        %v1916 = vpack.c.b16 %v1528, %v1524
        %v1917 = vpack.c.b16 %v1529, %v1525
        %v1918 = vpack.c.b16 %v1530, %v1526
        %v1919 = vpack.c.b16 %v1535, %v1531
        %v1920 = vpack.c.b16 %v1536, %v1532
        %v1921 = vpack.c.b16 %v1537, %v1533
        %v1922 = vpack.c.b16 %v1538, %v1534
        %v1923 = vpack.c.b16 %v1543, %v1539
        %v1924 = vpack.c.b16 %v1544, %v1540
        %v1925 = vpack.c.b16 %v1545, %v1541
        %v1926 = vpack.c.b16 %v1546, %v1542
        %v1927 = vpack.c.b16 %v1551, %v1547
        %v1928 = vpack.c.b16 %v1552, %v1548
        %v1929 = vpack.c.b16 %v1553, %v1549
        %v1930 = vpack.c.b16 %v1554, %v1550
        %v1931 = vpack.c.b16 %v1559, %v1555
        %v1932 = vpack.c.b16 %v1560, %v1556
        %v1933 = vpack.c.b16 %v1561, %v1557
        %v1934 = vpack.c.b16 %v1562, %v1558
        %v1935 = vpack.c.b16 %v1567, %v1563
        %v1936 = vpack.c.b16 %v1568, %v1564
        %v1937 = vpack.c.b16 %v1569, %v1565
        %v1938 = vpack.c.b16 %v1570, %v1566
        %v1939 = vpack.c.b16 %v1575, %v1571
        %v1940 = vpack.c.b16 %v1576, %v1572
        %v1941 = vpack.c.b16 %v1577, %v1573
        %v1942 = vpack.c.b16 %v1578, %v1574
        %v1943 = vpack.c.b16 %v1583, %v1579
        %v1944 = vpack.c.b16 %v1584, %v1580
        %v1945 = vpack.c.b16 %v1585, %v1581
        %v1946 = vpack.c.b16 %v1586, %v1582
        %v1947 = vpack.c.b16 %v1591, %v1587
        %v1948 = vpack.c.b16 %v1592, %v1588
        %v1949 = vpack.c.b16 %v1593, %v1589
        %v1950 = vpack.c.b16 %v1594, %v1590
        %v1951 = vpack.c.b16 %v1599, %v1595
        %v1952 = vpack.c.b16 %v1600, %v1596
        %v1953 = vpack.c.b16 %v1601, %v1597
        %v1954 = vpack.c.b16 %v1602, %v1598
        %v1955 = vpack.c.b16 %v1607, %v1603
        %v1956 = vpack.c.b16 %v1608, %v1604
        %v1957 = vpack.c.b16 %v1609, %v1605
        %v1958 = vpack.c.b16 %v1610, %v1606
        %v1959 = vpack.c.b16 %v1615, %v1611
        %v1960 = vpack.c.b16 %v1616, %v1612
        %v1961 = vpack.c.b16 %v1617, %v1613
        %v1962 = vpack.c.b16 %v1618, %v1614
        %v1963 = vpack.c.b16 %v1623, %v1619
        %v1964 = vpack.c.b16 %v1624, %v1620
        %v1965 = vpack.c.b16 %v1625, %v1621
        %v1966 = vpack.c.b16 %v1626, %v1622
        %v1967 = vpack.c.b16 %v1631, %v1627
        %v1968 = vpack.c.b16 %v1632, %v1628
        %v1969 = vpack.c.b16 %v1633, %v1629
        %v1970 = vpack.c.b16 %v1634, %v1630
        %v1971 = vpack.c.b16 %v1639, %v1635
        %v1972 = vpack.c.b16 %v1640, %v1636
        %v1973 = vpack.c.b16 %v1641, %v1637
        %v1974 = vpack.c.b16 %v1642, %v1638
        %v1975 = vpack.c.b16 %v1647, %v1643
        %v1976 = vpack.c.b16 %v1648, %v1644
        %v1977 = vpack.c.b16 %v1649, %v1645
        %v1978 = vpack.c.b16 %v1650, %v1646
        %v1979 = vpack.c.b16 %v1655, %v1651
        %v1980 = vpack.c.b16 %v1656, %v1652
        %v1981 = vpack.c.b16 %v1657, %v1653
        %v1982 = vpack.c.b16 %v1658, %v1654
        %v1983 = vpack.c.b16 %v1663, %v1659
        %v1984 = vpack.c.b16 %v1664, %v1660
        %v1985 = vpack.c.b16 %v1665, %v1661
        %v1986 = vpack.c.b16 %v1666, %v1662
        %v1987 = vpack.c.b16 %v1671, %v1667
        %v1988 = vpack.c.b16 %v1672, %v1668
        %v1989 = vpack.c.b16 %v1673, %v1669
        %v1990 = vpack.c.b16 %v1674, %v1670
        %v1991 = vpack.c.b16 %v1679, %v1675
        %v1992 = vpack.c.b16 %v1680, %v1676
        %v1993 = vpack.c.b16 %v1681, %v1677
        %v1994 = vpack.c.b16 %v1682, %v1678
        %v1995 = vpack.c.b16 %v1687, %v1683
        %v1996 = vpack.c.b16 %v1688, %v1684
        %v1997 = vpack.c.b16 %v1689, %v1685
        %v1998 = vpack.c.b16 %v1690, %v1686
        %v1999 = vpack.c.b16 %v1695, %v1691
        %v2000 = vpack.c.b16 %v1696, %v1692
        %v2001 = vpack.c.b16 %v1697, %v1693
        %v2002 = vpack.c.b16 %v1698, %v1694
        %v2003 = vpack.c.b16 %v1703, %v1699
        %v2004 = vpack.c.b16 %v1704, %v1700
        %v2005 = vpack.c.b16 %v1705, %v1701
        %v2006 = vpack.c.b16 %v1706, %v1702
        %v2007 = vpack.c.b16 %v1711, %v1707
        %v2008 = vpack.c.b16 %v1712, %v1708
        %v2009 = vpack.c.b16 %v1713, %v1709
        %v2010 = vpack.c.b16 %v1714, %v1710
        %v2011 = vpack.c.b16 %v1719, %v1715
        %v2012 = vpack.c.b16 %v1720, %v1716
        %v2013 = vpack.c.b16 %v1721, %v1717
        %v2014 = vpack.c.b16 %v1722, %v1718
        %v2015 = vpack.c.b16 %v1727, %v1723
        %v2016 = vpack.c.b16 %v1728, %v1724
        %v2017 = vpack.c.b16 %v1729, %v1725
        %v2018 = vpack.c.b16 %v1730, %v1726
        %v2019 = vpack.c.b16 %v1735, %v1731
        %v2020 = vpack.c.b16 %v1736, %v1732
        %v2021 = vpack.c.b16 %v1737, %v1733
        %v2022 = vpack.c.b16 %v1738, %v1734
        %v2023 = vpack.c.b16 %v1743, %v1739
        %v2024 = vpack.c.b16 %v1744, %v1740
        %v2025 = vpack.c.b16 %v1745, %v1741
        %v2026 = vpack.c.b16 %v1746, %v1742
        %v2027 = vpack.c.b16 %v1751, %v1747
        %v2028 = vpack.c.b16 %v1752, %v1748
        %v2029 = vpack.c.b16 %v1753, %v1749
        %v2030 = vpack.c.b16 %v1754, %v1750
        %v2031 = vpack.c.b16 %v1759, %v1755
        %v2032 = vpack.c.b16 %v1760, %v1756
        %v2033 = vpack.c.b16 %v1761, %v1757
        %v2034 = vpack.c.b16 %v1762, %v1758
        %v2035 = vpack.c.b16 %v1767, %v1763
        %v2036 = vpack.c.b16 %v1768, %v1764
        %v2037 = vpack.c.b16 %v1769, %v1765
        %v2038 = vpack.c.b16 %v1770, %v1766
        %v2039 = vpack.c.b16 %v1775, %v1771
        %v2040 = vpack.c.b16 %v1776, %v1772
        %v2041 = vpack.c.b16 %v1777, %v1773
        %v2042 = vpack.c.b16 %v1778, %v1774
        %v2043 = vpack.c.b16 %v1783, %v1779
        %v2044 = vpack.c.b16 %v1784, %v1780
        %v2045 = vpack.c.b16 %v1785, %v1781
        %v2046 = vpack.c.b16 %v1786, %v1782
        %v2047 = vpack.c.b16 %v1791, %v1787
        %v2048 = vpack.c.b16 %v1792, %v1788
        %v2049 = vpack.c.b16 %v1793, %v1789
        %v2050 = vpack.c.b16 %v1794, %v1790
        %2307 = vmatprep.subr.bf16.mxu0 %v1796
        %2308 = vmatpush1.bf16.msra.mxu0 %v1795
        %2309 = vmatprep.subr.bf16.mxu0 %v1800
        %2310 = vmatpush1.bf16.msra.mxu0 %v1799
        %2311 = vmatprep.subr.bf16.mxu0 %v1804
        %2312 = vmatpush1.bf16.msra.mxu0 %v1803
        %2313 = vmatprep.subr.bf16.mxu0 %v1808
        %2314 = vmatpush1.bf16.msra.mxu0 %v1807
        %2315 = vmatprep.subr.bf16.mxu0 %v1812
        %2316 = vmatpush1.bf16.msra.mxu0 %v1811
        %2317 = vmatprep.subr.bf16.mxu0 %v1816
        %2318 = vmatpush1.bf16.msra.mxu0 %v1815
        %2319 = vmatprep.subr.bf16.mxu0 %v1820
        %2320 = vmatpush1.bf16.msra.mxu0 %v1819
        %2321 = vmatprep.subr.bf16.mxu0 %v1824
        %2322 = vmatpush1.bf16.msra.mxu0 %v1823
        %2323 = vmatprep.subr.bf16.mxu0 %v1828
        %2324 = vmatpush1.bf16.msra.mxu0 %v1827
        %2325 = vmatprep.subr.bf16.mxu0 %v1832
        %2326 = vmatpush1.bf16.msra.mxu0 %v1831
        %2327 = vmatprep.subr.bf16.mxu0 %v1836
        %2328 = vmatpush1.bf16.msra.mxu0 %v1835
        %2329 = vmatprep.subr.bf16.mxu0 %v1840
        %2330 = vmatpush1.bf16.msra.mxu0 %v1839
        %2331 = vmatprep.subr.bf16.mxu0 %v1844
        %2332 = vmatpush1.bf16.msra.mxu0 %v1843
        %2333 = vmatprep.subr.bf16.mxu0 %v1848
        %2334 = vmatpush1.bf16.msra.mxu0 %v1847
        %2335 = vmatprep.subr.bf16.mxu0 %v1852
        %2336 = vmatpush1.bf16.msra.mxu0 %v1851
        %2337 = vmatprep.subr.bf16.mxu0 %v1856
        %2338 = vmatpush1.bf16.msra.mxu0 %v1855
        %2339 = vmatprep.mubr.bf16.mxu0 %v718
        %2340 = vmatmul.mubr.bf16.gmra.mrb[0].mxu0 %v717
        %v2341 = vpop.f32.mrb[0].mxu0
        %v2342 = vadd.f32 %v1014, %v2341
        %v2343 = vpop.f32.mrb[0].mxu0
        %v2344 = vadd.f32 %v1018, %v2343
        %v2345 = vpop.f32.mrb[0].mxu0
        %v2346 = vadd.f32 %v1014, %v2345
        %v2347 = vpop.f32.mrb[0].mxu0
        %v2348 = vadd.f32 %v1018, %v2347
        %2349 = vmatprep.mubr.bf16.mxu0 %v726
        %2350 = vmatmul.mubr.bf16.gmra.mrb[0].mxu0 %v725
        %v2351 = vpop.f32.mrb[0].mxu0
        %v2352 = vadd.f32 %v1014, %v2351
        %v2353 = vpop.f32.mrb[0].mxu0
        %v2354 = vadd.f32 %v1018, %v2353
        %v2355 = vpop.f32.mrb[0].mxu0
        %v2356 = vadd.f32 %v1014, %v2355
        %v2357 = vpop.f32.mrb[0].mxu0
        %v2358 = vadd.f32 %v1018, %v2357
        %2359 = vmatprep.mubr.bf16.mxu0 %v734
        %2360 = vmatmul.mubr.bf16.gmra.mrb[0].mxu0 %v733
        %v2361 = vpop.f32.mrb[0].mxu0
        %v2362 = vadd.f32 %v1014, %v2361
        %v2363 = vpop.f32.mrb[0].mxu0
        %v2364 = vadd.f32 %v1018, %v2363
        %v2365 = vpop.f32.mrb[0].mxu0
        %v2366 = vadd.f32 %v1014, %v2365
        %v2367 = vpop.f32.mrb[0].mxu0
        %v2368 = vadd.f32 %v1018, %v2367
        %2369 = vmatprep.mubr.bf16.mxu0 %v742
        %2370 = vmatmul.mubr.bf16.gmra.mrb[0].mxu0 %v741
        %v2371 = vpop.f32.mrb[0].mxu0
        %v2372 = vadd.f32 %v1014, %v2371
        %v2373 = vpop.f32.mrb[0].mxu0
        %v2374 = vadd.f32 %v1018, %v2373
        %v2375 = vpop.f32.mrb[0].mxu0
        %v2376 = vadd.f32 %v1014, %v2375
        %v2377 = vpop.f32.mrb[0].mxu0
        %v2378 = vadd.f32 %v1018, %v2377
        %2379 = vdwg.mxu0
        %2380 = vmatprep.subr.bf16.mxu0 %v1860
        %2381 = vmatpush1.bf16.msra.mxu0 %v1859
        %2382 = vmatprep.subr.bf16.mxu0 %v1864
        %2383 = vmatpush1.bf16.msra.mxu0 %v1863
        %2384 = vmatprep.subr.bf16.mxu0 %v1868
        %2385 = vmatpush1.bf16.msra.mxu0 %v1867
        %2386 = vmatprep.subr.bf16.mxu0 %v1872
        %2387 = vmatpush1.bf16.msra.mxu0 %v1871
        %2388 = vmatprep.subr.bf16.mxu0 %v1876
        %2389 = vmatpush1.bf16.msra.mxu0 %v1875
        %2390 = vmatprep.subr.bf16.mxu0 %v1880
        %2391 = vmatpush1.bf16.msra.mxu0 %v1879
        %2392 = vmatprep.subr.bf16.mxu0 %v1884
        %2393 = vmatpush1.bf16.msra.mxu0 %v1883
        %2394 = vmatprep.subr.bf16.mxu0 %v1888
        %2395 = vmatpush1.bf16.msra.mxu0 %v1887
        %2396 = vmatprep.subr.bf16.mxu0 %v1892
        %2397 = vmatpush1.bf16.msra.mxu0 %v1891
        %2398 = vmatprep.subr.bf16.mxu0 %v1896
        %2399 = vmatpush1.bf16.msra.mxu0 %v1895
        %2400 = vmatprep.subr.bf16.mxu0 %v1900
        %2401 = vmatpush1.bf16.msra.mxu0 %v1899
        %2402 = vmatprep.subr.bf16.mxu0 %v1904
        %2403 = vmatpush1.bf16.msra.mxu0 %v1903
        %2404 = vmatprep.subr.bf16.mxu0 %v1908
        %2405 = vmatpush1.bf16.msra.mxu0 %v1907
        %2406 = vmatprep.subr.bf16.mxu0 %v1912
        %2407 = vmatpush1.bf16.msra.mxu0 %v1911
        %2408 = vmatprep.subr.bf16.mxu0 %v1916
        %2409 = vmatpush1.bf16.msra.mxu0 %v1915
        %2410 = vmatprep.subr.bf16.mxu0 %v1920
        %2411 = vmatpush1.bf16.msra.mxu0 %v1919
        %2412 = vmatprep.mubr.bf16.mxu0 %v720
        %2413 = vmatmul.mubr.bf16.gmra.mrb[0].mxu0 %v719
        %v2414 = vpop.f32.mrb[0].mxu0
        %v2415 = vadd.f32 %v2342, %v2414
        %v2416 = vpop.f32.mrb[0].mxu0
        %v2417 = vadd.f32 %v2344, %v2416
        %v2418 = vpop.f32.mrb[0].mxu0
        %v2419 = vadd.f32 %v2346, %v2418
        %v2420 = vpop.f32.mrb[0].mxu0
        %v2421 = vadd.f32 %v2348, %v2420
        %2422 = vmatprep.mubr.bf16.mxu0 %v728
        %2423 = vmatmul.mubr.bf16.gmra.mrb[0].mxu0 %v727
        %v2424 = vpop.f32.mrb[0].mxu0
        %v2425 = vadd.f32 %v2352, %v2424
        %v2426 = vpop.f32.mrb[0].mxu0
        %v2427 = vadd.f32 %v2354, %v2426
        %v2428 = vpop.f32.mrb[0].mxu0
        %v2429 = vadd.f32 %v2356, %v2428
        %v2430 = vpop.f32.mrb[0].mxu0
        %v2431 = vadd.f32 %v2358, %v2430
        %2432 = vmatprep.mubr.bf16.mxu0 %v736
        %2433 = vmatmul.mubr.bf16.gmra.mrb[0].mxu0 %v735
        %v2434 = vpop.f32.mrb[0].mxu0
        %v2435 = vadd.f32 %v2362, %v2434
        %v2436 = vpop.f32.mrb[0].mxu0
        %v2437 = vadd.f32 %v2364, %v2436
        %v2438 = vpop.f32.mrb[0].mxu0
        %v2439 = vadd.f32 %v2366, %v2438
        %v2440 = vpop.f32.mrb[0].mxu0
        %v2441 = vadd.f32 %v2368, %v2440
        %2442 = vmatprep.mubr.bf16.mxu0 %v744
        %2443 = vmatmul.mubr.bf16.gmra.mrb[0].mxu0 %v743
        %v2444 = vpop.f32.mrb[0].mxu0
        %v2445 = vadd.f32 %v2372, %v2444
        %v2446 = vpop.f32.mrb[0].mxu0
        %v2447 = vadd.f32 %v2374, %v2446
        %v2448 = vpop.f32.mrb[0].mxu0
        %v2449 = vadd.f32 %v2376, %v2448
        %v2450 = vpop.f32.mrb[0].mxu0
        %v2451 = vadd.f32 %v2378, %v2450
        %2452 = vdwg.mxu0
        %2453 = vmatprep.subr.bf16.mxu0 %v1924
        %2454 = vmatpush1.bf16.msra.mxu0 %v1923
        %2455 = vmatprep.subr.bf16.mxu0 %v1928
        %2456 = vmatpush1.bf16.msra.mxu0 %v1927
        %2457 = vmatprep.subr.bf16.mxu0 %v1932
        %2458 = vmatpush1.bf16.msra.mxu0 %v1931
        %2459 = vmatprep.subr.bf16.mxu0 %v1936
        %2460 = vmatpush1.bf16.msra.mxu0 %v1935
        %2461 = vmatprep.subr.bf16.mxu0 %v1940
        %2462 = vmatpush1.bf16.msra.mxu0 %v1939
        %2463 = vmatprep.subr.bf16.mxu0 %v1944
        %2464 = vmatpush1.bf16.msra.mxu0 %v1943
        %2465 = vmatprep.subr.bf16.mxu0 %v1948
        %2466 = vmatpush1.bf16.msra.mxu0 %v1947
        %2467 = vmatprep.subr.bf16.mxu0 %v1952
        %2468 = vmatpush1.bf16.msra.mxu0 %v1951
        %2469 = vmatprep.subr.bf16.mxu0 %v1956
        %2470 = vmatpush1.bf16.msra.mxu0 %v1955
        %2471 = vmatprep.subr.bf16.mxu0 %v1960
        %2472 = vmatpush1.bf16.msra.mxu0 %v1959
        %2473 = vmatprep.subr.bf16.mxu0 %v1964
        %2474 = vmatpush1.bf16.msra.mxu0 %v1963
        %2475 = vmatprep.subr.bf16.mxu0 %v1968
        %2476 = vmatpush1.bf16.msra.mxu0 %v1967
        %2477 = vmatprep.subr.bf16.mxu0 %v1972
        %2478 = vmatpush1.bf16.msra.mxu0 %v1971
        %2479 = vmatprep.subr.bf16.mxu0 %v1976
        %2480 = vmatpush1.bf16.msra.mxu0 %v1975
        %2481 = vmatprep.subr.bf16.mxu0 %v1980
        %2482 = vmatpush1.bf16.msra.mxu0 %v1979
        %2483 = vmatprep.subr.bf16.mxu0 %v1984
        %2484 = vmatpush1.bf16.msra.mxu0 %v1983
        %2485 = vmatprep.mubr.bf16.mxu0 %v722
        %2486 = vmatmul.mubr.bf16.gmra.mrb[0].mxu0 %v721
        %v2487 = vpop.f32.mrb[0].mxu0
        %v2488 = vadd.f32 %v2415, %v2487
        %v2489 = vpop.f32.mrb[0].mxu0
        %v2490 = vadd.f32 %v2417, %v2489
        %v2491 = vpop.f32.mrb[0].mxu0
        %v2492 = vadd.f32 %v2419, %v2491
        %v2493 = vpop.f32.mrb[0].mxu0
        %v2494 = vadd.f32 %v2421, %v2493
        %2495 = vmatprep.mubr.bf16.mxu0 %v730
        %2496 = vmatmul.mubr.bf16.gmra.mrb[0].mxu0 %v729
        %v2497 = vpop.f32.mrb[0].mxu0
        %v2498 = vadd.f32 %v2425, %v2497
        %v2499 = vpop.f32.mrb[0].mxu0
        %v2500 = vadd.f32 %v2427, %v2499
        %v2501 = vpop.f32.mrb[0].mxu0
        %v2502 = vadd.f32 %v2429, %v2501
        %v2503 = vpop.f32.mrb[0].mxu0
        %v2504 = vadd.f32 %v2431, %v2503
        %2505 = vmatprep.mubr.bf16.mxu0 %v738
        %2506 = vmatmul.mubr.bf16.gmra.mrb[0].mxu0 %v737
        %v2507 = vpop.f32.mrb[0].mxu0
        %v2508 = vadd.f32 %v2435, %v2507
        %v2509 = vpop.f32.mrb[0].mxu0
        %v2510 = vadd.f32 %v2437, %v2509
        %v2511 = vpop.f32.mrb[0].mxu0
        %v2512 = vadd.f32 %v2439, %v2511
        %v2513 = vpop.f32.mrb[0].mxu0
        %v2514 = vadd.f32 %v2441, %v2513
        %2515 = vmatprep.mubr.bf16.mxu0 %v746
        %2516 = vmatmul.mubr.bf16.gmra.mrb[0].mxu0 %v745
        %v2517 = vpop.f32.mrb[0].mxu0
        %v2518 = vadd.f32 %v2445, %v2517
        %v2519 = vpop.f32.mrb[0].mxu0
        %v2520 = vadd.f32 %v2447, %v2519
        %v2521 = vpop.f32.mrb[0].mxu0
        %v2522 = vadd.f32 %v2449, %v2521
        %v2523 = vpop.f32.mrb[0].mxu0
        %v2524 = vadd.f32 %v2451, %v2523
        %2525 = vdwg.mxu0
        %2526 = vmatprep.subr.bf16.mxu0 %v1988
        %2527 = vmatpush1.bf16.msra.mxu0 %v1987
        %2528 = vmatprep.subr.bf16.mxu0 %v1992
        %2529 = vmatpush1.bf16.msra.mxu0 %v1991
        %2530 = vmatprep.subr.bf16.mxu0 %v1996
        %2531 = vmatpush1.bf16.msra.mxu0 %v1995
        %2532 = vmatprep.subr.bf16.mxu0 %v2000
        %2533 = vmatpush1.bf16.msra.mxu0 %v1999
        %2534 = vmatprep.subr.bf16.mxu0 %v2004
        %2535 = vmatpush1.bf16.msra.mxu0 %v2003
        %2536 = vmatprep.subr.bf16.mxu0 %v2008
        %2537 = vmatpush1.bf16.msra.mxu0 %v2007
        %2538 = vmatprep.subr.bf16.mxu0 %v2012
        %2539 = vmatpush1.bf16.msra.mxu0 %v2011
        %2540 = vmatprep.subr.bf16.mxu0 %v2016
        %2541 = vmatpush1.bf16.msra.mxu0 %v2015
        %2542 = vmatprep.subr.bf16.mxu0 %v2020
        %2543 = vmatpush1.bf16.msra.mxu0 %v2019
        %2544 = vmatprep.subr.bf16.mxu0 %v2024
        %2545 = vmatpush1.bf16.msra.mxu0 %v2023
        %2546 = vmatprep.subr.bf16.mxu0 %v2028
        %2547 = vmatpush1.bf16.msra.mxu0 %v2027
        %2548 = vmatprep.subr.bf16.mxu0 %v2032
        %2549 = vmatpush1.bf16.msra.mxu0 %v2031
        %2550 = vmatprep.subr.bf16.mxu0 %v2036
        %2551 = vmatpush1.bf16.msra.mxu0 %v2035
        %2552 = vmatprep.subr.bf16.mxu0 %v2040
        %2553 = vmatpush1.bf16.msra.mxu0 %v2039
        %2554 = vmatprep.subr.bf16.mxu0 %v2044
        %2555 = vmatpush1.bf16.msra.mxu0 %v2043
        %2556 = vmatprep.subr.bf16.mxu0 %v2048
        %2557 = vmatpush1.bf16.msra.mxu0 %v2047
        %2558 = vmatprep.mubr.bf16.mxu0 %v724
        %2559 = vmatmul.mubr.bf16.gmra.mrb[0].mxu0 %v723
        %v2560 = vpop.f32.mrb[0].mxu0
        %v2561 = vadd.f32 %v2488, %v2560
        %v2562 = vpop.f32.mrb[0].mxu0
        %v2563 = vadd.f32 %v2490, %v2562
        %v2564 = vpop.f32.mrb[0].mxu0
        %v2565 = vadd.f32 %v2492, %v2564
        %v2566 = vpop.f32.mrb[0].mxu0
        %v2567 = vadd.f32 %v2494, %v2566
        %2568 = vmatprep.mubr.bf16.mxu0 %v732
        %2569 = vmatmul.mubr.bf16.gmra.mrb[0].mxu0 %v731
        %v2570 = vpop.f32.mrb[0].mxu0
        %v2571 = vadd.f32 %v2498, %v2570
        %v2572 = vpop.f32.mrb[0].mxu0
        %v2573 = vadd.f32 %v2500, %v2572
        %v2574 = vpop.f32.mrb[0].mxu0
        %v2575 = vadd.f32 %v2502, %v2574
        %v2576 = vpop.f32.mrb[0].mxu0
        %v2577 = vadd.f32 %v2504, %v2576
        %2578 = vmatprep.mubr.bf16.mxu0 %v740
        %2579 = vmatmul.mubr.bf16.gmra.mrb[0].mxu0 %v739
        %v2580 = vpop.f32.mrb[0].mxu0
        %v2581 = vadd.f32 %v2508, %v2580
        %v2582 = vpop.f32.mrb[0].mxu0
        %v2583 = vadd.f32 %v2510, %v2582
        %v2584 = vpop.f32.mrb[0].mxu0
        %v2585 = vadd.f32 %v2512, %v2584
        %v2586 = vpop.f32.mrb[0].mxu0
        %v2587 = vadd.f32 %v2514, %v2586
        %2588 = vmatprep.mubr.bf16.mxu0 %v748
        %2589 = vmatmul.mubr.bf16.gmra.mrb[0].mxu0 %v747
        %v2590 = vpop.f32.mrb[0].mxu0
        %v2591 = vadd.f32 %v2518, %v2590
        %v2592 = vpop.f32.mrb[0].mxu0
        %v2593 = vadd.f32 %v2520, %v2592
        %v2594 = vpop.f32.mrb[0].mxu0
        %v2595 = vadd.f32 %v2522, %v2594
        %v2596 = vpop.f32.mrb[0].mxu0
        %v2597 = vadd.f32 %v2524, %v2596
        %2598 = vdwg.mxu0
        %2599 = vmatprep.subr.bf16.mxu0 %v1798
        %2600 = vmatpush1.bf16.msra.mxu0 %v1797
        %2601 = vmatprep.subr.bf16.mxu0 %v1802
        %2602 = vmatpush1.bf16.msra.mxu0 %v1801
        %2603 = vmatprep.subr.bf16.mxu0 %v1806
        %2604 = vmatpush1.bf16.msra.mxu0 %v1805
        %2605 = vmatprep.subr.bf16.mxu0 %v1810
        %2606 = vmatpush1.bf16.msra.mxu0 %v1809
        %2607 = vmatprep.subr.bf16.mxu0 %v1814
        %2608 = vmatpush1.bf16.msra.mxu0 %v1813
        %2609 = vmatprep.subr.bf16.mxu0 %v1818
        %2610 = vmatpush1.bf16.msra.mxu0 %v1817
        %2611 = vmatprep.subr.bf16.mxu0 %v1822
        %2612 = vmatpush1.bf16.msra.mxu0 %v1821
        %2613 = vmatprep.subr.bf16.mxu0 %v1826
        %2614 = vmatpush1.bf16.msra.mxu0 %v1825
        %2615 = vmatprep.subr.bf16.mxu0 %v1830
        %2616 = vmatpush1.bf16.msra.mxu0 %v1829
        %2617 = vmatprep.subr.bf16.mxu0 %v1834
        %2618 = vmatpush1.bf16.msra.mxu0 %v1833
        %2619 = vmatprep.subr.bf16.mxu0 %v1838
        %2620 = vmatpush1.bf16.msra.mxu0 %v1837
        %2621 = vmatprep.subr.bf16.mxu0 %v1842
        %2622 = vmatpush1.bf16.msra.mxu0 %v1841
        %2623 = vmatprep.subr.bf16.mxu0 %v1846
        %2624 = vmatpush1.bf16.msra.mxu0 %v1845
        %2625 = vmatprep.subr.bf16.mxu0 %v1850
        %2626 = vmatpush1.bf16.msra.mxu0 %v1849
        %2627 = vmatprep.subr.bf16.mxu0 %v1854
        %2628 = vmatpush1.bf16.msra.mxu0 %v1853
        %2629 = vmatprep.subr.bf16.mxu0 %v1858
        %2630 = vmatpush1.bf16.msra.mxu0 %v1857
        %2631 = vmatprep.mubr.bf16.mxu0 %v718
        %2632 = vmatmul.mubr.bf16.gmra.mrb[0].mxu0 %v717
        %v2633 = vpop.f32.mrb[0].mxu0
        %v2634 = vadd.f32 %v1022, %v2633
        %v2635 = vpop.f32.mrb[0].mxu0
        %v2636 = vadd.f32 %v1026, %v2635
        %v2637 = vpop.f32.mrb[0].mxu0
        %v2638 = vadd.f32 %v1022, %v2637
        %v2639 = vpop.f32.mrb[0].mxu0
        %v2640 = vadd.f32 %v1026, %v2639
        %2641 = vmatprep.mubr.bf16.mxu0 %v726
        %2642 = vmatmul.mubr.bf16.gmra.mrb[0].mxu0 %v725
        %v2643 = vpop.f32.mrb[0].mxu0
        %v2644 = vadd.f32 %v1022, %v2643
        %v2645 = vpop.f32.mrb[0].mxu0
        %v2646 = vadd.f32 %v1026, %v2645
        %v2647 = vpop.f32.mrb[0].mxu0
        %v2648 = vadd.f32 %v1022, %v2647
        %v2649 = vpop.f32.mrb[0].mxu0
        %v2650 = vadd.f32 %v1026, %v2649
        %2651 = vmatprep.mubr.bf16.mxu0 %v734
        %2652 = vmatmul.mubr.bf16.gmra.mrb[0].mxu0 %v733
        %v2653 = vpop.f32.mrb[0].mxu0
        %v2654 = vadd.f32 %v1022, %v2653
        %v2655 = vpop.f32.mrb[0].mxu0
        %v2656 = vadd.f32 %v1026, %v2655
        %v2657 = vpop.f32.mrb[0].mxu0
        %v2658 = vadd.f32 %v1022, %v2657
        %v2659 = vpop.f32.mrb[0].mxu0
        %v2660 = vadd.f32 %v1026, %v2659
        %2661 = vmatprep.mubr.bf16.mxu0 %v742
        %2662 = vmatmul.mubr.bf16.gmra.mrb[0].mxu0 %v741
        %v2663 = vpop.f32.mrb[0].mxu0
        %v2664 = vadd.f32 %v1022, %v2663
        %v2665 = vpop.f32.mrb[0].mxu0
        %v2666 = vadd.f32 %v1026, %v2665
        %v2667 = vpop.f32.mrb[0].mxu0
        %v2668 = vadd.f32 %v1022, %v2667
        %v2669 = vpop.f32.mrb[0].mxu0
        %v2670 = vadd.f32 %v1026, %v2669
        %2671 = vdwg.mxu0
        %2672 = vmatprep.subr.bf16.mxu0 %v1862
        %2673 = vmatpush1.bf16.msra.mxu0 %v1861
        %2674 = vmatprep.subr.bf16.mxu0 %v1866
        %2675 = vmatpush1.bf16.msra.mxu0 %v1865
        %2676 = vmatprep.subr.bf16.mxu0 %v1870
        %2677 = vmatpush1.bf16.msra.mxu0 %v1869
        %2678 = vmatprep.subr.bf16.mxu0 %v1874
        %2679 = vmatpush1.bf16.msra.mxu0 %v1873
        %2680 = vmatprep.subr.bf16.mxu0 %v1878
        %2681 = vmatpush1.bf16.msra.mxu0 %v1877
        %2682 = vmatprep.subr.bf16.mxu0 %v1882
        %2683 = vmatpush1.bf16.msra.mxu0 %v1881
        %2684 = vmatprep.subr.bf16.mxu0 %v1886
        %2685 = vmatpush1.bf16.msra.mxu0 %v1885
        %2686 = vmatprep.subr.bf16.mxu0 %v1890
        %2687 = vmatpush1.bf16.msra.mxu0 %v1889
        %2688 = vmatprep.subr.bf16.mxu0 %v1894
        %2689 = vmatpush1.bf16.msra.mxu0 %v1893
        %2690 = vmatprep.subr.bf16.mxu0 %v1898
        %2691 = vmatpush1.bf16.msra.mxu0 %v1897
        %2692 = vmatprep.subr.bf16.mxu0 %v1902
        %2693 = vmatpush1.bf16.msra.mxu0 %v1901
        %2694 = vmatprep.subr.bf16.mxu0 %v1906
        %2695 = vmatpush1.bf16.msra.mxu0 %v1905
        %2696 = vmatprep.subr.bf16.mxu0 %v1910
        %2697 = vmatpush1.bf16.msra.mxu0 %v1909
        %2698 = vmatprep.subr.bf16.mxu0 %v1914
        %2699 = vmatpush1.bf16.msra.mxu0 %v1913
        %2700 = vmatprep.subr.bf16.mxu0 %v1918
        %2701 = vmatpush1.bf16.msra.mxu0 %v1917
        %2702 = vmatprep.subr.bf16.mxu0 %v1922
        %2703 = vmatpush1.bf16.msra.mxu0 %v1921
        %2704 = vmatprep.mubr.bf16.mxu0 %v720
        %2705 = vmatmul.mubr.bf16.gmra.mrb[0].mxu0 %v719
        %v2706 = vpop.f32.mrb[0].mxu0
        %v2707 = vadd.f32 %v2634, %v2706
        %v2708 = vpop.f32.mrb[0].mxu0
        %v2709 = vadd.f32 %v2636, %v2708
        %v2710 = vpop.f32.mrb[0].mxu0
        %v2711 = vadd.f32 %v2638, %v2710
        %v2712 = vpop.f32.mrb[0].mxu0
        %v2713 = vadd.f32 %v2640, %v2712
        %2714 = vmatprep.mubr.bf16.mxu0 %v728
        %2715 = vmatmul.mubr.bf16.gmra.mrb[0].mxu0 %v727
        %v2716 = vpop.f32.mrb[0].mxu0
        %v2717 = vadd.f32 %v2644, %v2716
        %v2718 = vpop.f32.mrb[0].mxu0
        %v2719 = vadd.f32 %v2646, %v2718
        %v2720 = vpop.f32.mrb[0].mxu0
        %v2721 = vadd.f32 %v2648, %v2720
        %v2722 = vpop.f32.mrb[0].mxu0
        %v2723 = vadd.f32 %v2650, %v2722
        %2724 = vmatprep.mubr.bf16.mxu0 %v736
        %2725 = vmatmul.mubr.bf16.gmra.mrb[0].mxu0 %v735
        %v2726 = vpop.f32.mrb[0].mxu0
        %v2727 = vadd.f32 %v2654, %v2726
        %v2728 = vpop.f32.mrb[0].mxu0
        %v2729 = vadd.f32 %v2656, %v2728
        %v2730 = vpop.f32.mrb[0].mxu0
        %v2731 = vadd.f32 %v2658, %v2730
        %v2732 = vpop.f32.mrb[0].mxu0
        %v2733 = vadd.f32 %v2660, %v2732
        %2734 = vmatprep.mubr.bf16.mxu0 %v744
        %2735 = vmatmul.mubr.bf16.gmra.mrb[0].mxu0 %v743
        %v2736 = vpop.f32.mrb[0].mxu0
        %v2737 = vadd.f32 %v2664, %v2736
        %v2738 = vpop.f32.mrb[0].mxu0
        %v2739 = vadd.f32 %v2666, %v2738
        %v2740 = vpop.f32.mrb[0].mxu0
        %v2741 = vadd.f32 %v2668, %v2740
        %v2742 = vpop.f32.mrb[0].mxu0
        %v2743 = vadd.f32 %v2670, %v2742
        %2744 = vdwg.mxu0
        %2745 = vmatprep.subr.bf16.mxu0 %v1926
        %2746 = vmatpush1.bf16.msra.mxu0 %v1925
        %2747 = vmatprep.subr.bf16.mxu0 %v1930
        %2748 = vmatpush1.bf16.msra.mxu0 %v1929
        %2749 = vmatprep.subr.bf16.mxu0 %v1934
        %2750 = vmatpush1.bf16.msra.mxu0 %v1933
        %2751 = vmatprep.subr.bf16.mxu0 %v1938
        %2752 = vmatpush1.bf16.msra.mxu0 %v1937
        %2753 = vmatprep.subr.bf16.mxu0 %v1942
        %2754 = vmatpush1.bf16.msra.mxu0 %v1941
        %2755 = vmatprep.subr.bf16.mxu0 %v1946
        %2756 = vmatpush1.bf16.msra.mxu0 %v1945
        %2757 = vmatprep.subr.bf16.mxu0 %v1950
        %2758 = vmatpush1.bf16.msra.mxu0 %v1949
        %2759 = vmatprep.subr.bf16.mxu0 %v1954
        %2760 = vmatpush1.bf16.msra.mxu0 %v1953
        %2761 = vmatprep.subr.bf16.mxu0 %v1958
        %2762 = vmatpush1.bf16.msra.mxu0 %v1957
        %2763 = vmatprep.subr.bf16.mxu0 %v1962
        %2764 = vmatpush1.bf16.msra.mxu0 %v1961
        %2765 = vmatprep.subr.bf16.mxu0 %v1966
        %2766 = vmatpush1.bf16.msra.mxu0 %v1965
        %2767 = vmatprep.subr.bf16.mxu0 %v1970
        %2768 = vmatpush1.bf16.msra.mxu0 %v1969
        %2769 = vmatprep.subr.bf16.mxu0 %v1974
        %2770 = vmatpush1.bf16.msra.mxu0 %v1973
        %2771 = vmatprep.subr.bf16.mxu0 %v1978
        %2772 = vmatpush1.bf16.msra.mxu0 %v1977
        %2773 = vmatprep.subr.bf16.mxu0 %v1982
        %2774 = vmatpush1.bf16.msra.mxu0 %v1981
        %2775 = vmatprep.subr.bf16.mxu0 %v1986
        %2776 = vmatpush1.bf16.msra.mxu0 %v1985
        %2777 = vmatprep.mubr.bf16.mxu0 %v722
        %2778 = vmatmul.mubr.bf16.gmra.mrb[0].mxu0 %v721
        %v2779 = vpop.f32.mrb[0].mxu0
        %v2780 = vadd.f32 %v2707, %v2779
        %v2781 = vpop.f32.mrb[0].mxu0
        %v2782 = vadd.f32 %v2709, %v2781
        %v2783 = vpop.f32.mrb[0].mxu0
        %v2784 = vadd.f32 %v2711, %v2783
        %v2785 = vpop.f32.mrb[0].mxu0
        %v2786 = vadd.f32 %v2713, %v2785
        %2787 = vmatprep.mubr.bf16.mxu0 %v730
        %2788 = vmatmul.mubr.bf16.gmra.mrb[0].mxu0 %v729
        %v2789 = vpop.f32.mrb[0].mxu0
        %v2790 = vadd.f32 %v2717, %v2789
        %v2791 = vpop.f32.mrb[0].mxu0
        %v2792 = vadd.f32 %v2719, %v2791
        %v2793 = vpop.f32.mrb[0].mxu0
        %v2794 = vadd.f32 %v2721, %v2793
        %v2795 = vpop.f32.mrb[0].mxu0
        %v2796 = vadd.f32 %v2723, %v2795
        %2797 = vmatprep.mubr.bf16.mxu0 %v738
        %2798 = vmatmul.mubr.bf16.gmra.mrb[0].mxu0 %v737
        %v2799 = vpop.f32.mrb[0].mxu0
        %v2800 = vadd.f32 %v2727, %v2799
        %v2801 = vpop.f32.mrb[0].mxu0
        %v2802 = vadd.f32 %v2729, %v2801
        %v2803 = vpop.f32.mrb[0].mxu0
        %v2804 = vadd.f32 %v2731, %v2803
        %v2805 = vpop.f32.mrb[0].mxu0
        %v2806 = vadd.f32 %v2733, %v2805
        %2807 = vmatprep.mubr.bf16.mxu0 %v746
        %2808 = vmatmul.mubr.bf16.gmra.mrb[0].mxu0 %v745
        %v2809 = vpop.f32.mrb[0].mxu0
        %v2810 = vadd.f32 %v2737, %v2809
        %v2811 = vpop.f32.mrb[0].mxu0
        %v2812 = vadd.f32 %v2739, %v2811
        %v2813 = vpop.f32.mrb[0].mxu0
        %v2814 = vadd.f32 %v2741, %v2813
        %v2815 = vpop.f32.mrb[0].mxu0
        %v2816 = vadd.f32 %v2743, %v2815
        %2817 = vdwg.mxu0
        %2818 = vmatprep.subr.bf16.mxu0 %v1990
        %2819 = vmatpush1.bf16.msra.mxu0 %v1989
        %2820 = vmatprep.subr.bf16.mxu0 %v1994
        %2821 = vmatpush1.bf16.msra.mxu0 %v1993
        %2822 = vmatprep.subr.bf16.mxu0 %v1998
        %2823 = vmatpush1.bf16.msra.mxu0 %v1997
        %2824 = vmatprep.subr.bf16.mxu0 %v2002
        %2825 = vmatpush1.bf16.msra.mxu0 %v2001
        %2826 = vmatprep.subr.bf16.mxu0 %v2006
        %2827 = vmatpush1.bf16.msra.mxu0 %v2005
        %2828 = vmatprep.subr.bf16.mxu0 %v2010
        %2829 = vmatpush1.bf16.msra.mxu0 %v2009
        %2830 = vmatprep.subr.bf16.mxu0 %v2014
        %2831 = vmatpush1.bf16.msra.mxu0 %v2013
        %2832 = vmatprep.subr.bf16.mxu0 %v2018
        %2833 = vmatpush1.bf16.msra.mxu0 %v2017
        %2834 = vmatprep.subr.bf16.mxu0 %v2022
        %2835 = vmatpush1.bf16.msra.mxu0 %v2021
        %2836 = vmatprep.subr.bf16.mxu0 %v2026
        %2837 = vmatpush1.bf16.msra.mxu0 %v2025
        %2838 = vmatprep.subr.bf16.mxu0 %v2030
        %2839 = vmatpush1.bf16.msra.mxu0 %v2029
        %2840 = vmatprep.subr.bf16.mxu0 %v2034
        %2841 = vmatpush1.bf16.msra.mxu0 %v2033
        %2842 = vmatprep.subr.bf16.mxu0 %v2038
        %2843 = vmatpush1.bf16.msra.mxu0 %v2037
        %2844 = vmatprep.subr.bf16.mxu0 %v2042
        %2845 = vmatpush1.bf16.msra.mxu0 %v2041
        %2846 = vmatprep.subr.bf16.mxu0 %v2046
        %2847 = vmatpush1.bf16.msra.mxu0 %v2045
        %2848 = vmatprep.subr.bf16.mxu0 %v2050
        %2849 = vmatpush1.bf16.msra.mxu0 %v2049
        %2850 = vmatprep.mubr.bf16.mxu0 %v724
        %2851 = vmatmul.mubr.bf16.gmra.mrb[0].mxu0 %v723
        %v2852 = vpop.f32.mrb[0].mxu0
        %v2853 = vadd.f32 %v2780, %v2852
        %v2854 = vpop.f32.mrb[0].mxu0
        %v2855 = vadd.f32 %v2782, %v2854
        %v2856 = vpop.f32.mrb[0].mxu0
        %v2857 = vadd.f32 %v2784, %v2856
        %v2858 = vpop.f32.mrb[0].mxu0
        %v2859 = vadd.f32 %v2786, %v2858
        %2860 = vmatprep.mubr.bf16.mxu0 %v732
        %2861 = vmatmul.mubr.bf16.gmra.mrb[0].mxu0 %v731
        %v2862 = vpop.f32.mrb[0].mxu0
        %v2863 = vadd.f32 %v2790, %v2862
        %v2864 = vpop.f32.mrb[0].mxu0
        %v2865 = vadd.f32 %v2792, %v2864
        %v2866 = vpop.f32.mrb[0].mxu0
        %v2867 = vadd.f32 %v2794, %v2866
        %v2868 = vpop.f32.mrb[0].mxu0
        %v2869 = vadd.f32 %v2796, %v2868
        %2870 = vmatprep.mubr.bf16.mxu0 %v740
        %2871 = vmatmul.mubr.bf16.gmra.mrb[0].mxu0 %v739
        %v2872 = vpop.f32.mrb[0].mxu0
        %v2873 = vadd.f32 %v2800, %v2872
        %v2874 = vpop.f32.mrb[0].mxu0
        %v2875 = vadd.f32 %v2802, %v2874
        %v2876 = vpop.f32.mrb[0].mxu0
        %v2877 = vadd.f32 %v2804, %v2876
        %v2878 = vpop.f32.mrb[0].mxu0
        %v2879 = vadd.f32 %v2806, %v2878
        %2880 = vmatprep.mubr.bf16.mxu0 %v748
        %2881 = vmatmul.mubr.bf16.gmra.mrb[0].mxu0 %v747
        %v2882 = vpop.f32.mrb[0].mxu0
        %v2883 = vadd.f32 %v2810, %v2882
        %v2884 = vpop.f32.mrb[0].mxu0
        %v2885 = vadd.f32 %v2812, %v2884
        %v2886 = vpop.f32.mrb[0].mxu0
        %v2887 = vadd.f32 %v2814, %v2886
        %v2888 = vpop.f32.mrb[0].mxu0
        %v2889 = vadd.f32 %v2816, %v2888
        %2890 = vdwg.mxu0
        %v2891 = vmax.f32 %v2561, 0.0
        %v2892 = vmax.f32 %v2563, 0.0
        %v2893 = vmax.f32 %v2853, 0.0
        %v2894 = vmax.f32 %v2855, 0.0
        %v2895 = vmax.f32 %v2565, 0.0
        %v2896 = vmax.f32 %v2567, 0.0
        %v2897 = vmax.f32 %v2857, 0.0
        %v2898 = vmax.f32 %v2859, 0.0
        %v2899 = vmax.f32 %v2571, 0.0
        %v2900 = vmax.f32 %v2573, 0.0
        %v2901 = vmax.f32 %v2863, 0.0
        %v2902 = vmax.f32 %v2865, 0.0
        %v2903 = vmax.f32 %v2575, 0.0
        %v2904 = vmax.f32 %v2577, 0.0
        %v2905 = vmax.f32 %v2867, 0.0
        %v2906 = vmax.f32 %v2869, 0.0
        %v2907 = vmax.f32 %v2581, 0.0
        %v2908 = vmax.f32 %v2583, 0.0
        %v2909 = vmax.f32 %v2873, 0.0
        %v2910 = vmax.f32 %v2875, 0.0
        %v2911 = vmax.f32 %v2585, 0.0
        %v2912 = vmax.f32 %v2587, 0.0
        %v2913 = vmax.f32 %v2877, 0.0
        %v2914 = vmax.f32 %v2879, 0.0
        %v2915 = vmax.f32 %v2591, 0.0
        %v2916 = vmax.f32 %v2593, 0.0
        %v2917 = vmax.f32 %v2883, 0.0
        %v2918 = vmax.f32 %v2885, 0.0
        %v2919 = vmax.f32 %v2595, 0.0
        %v2920 = vmax.f32 %v2597, 0.0
        %v2921 = vmax.f32 %v2887, 0.0
        %v2922 = vmax.f32 %v2889, 0.0
        %v2923 = vpack.c.bf16 %v2895, %v2891
        %v2924 = vpack.c.bf16 %v2896, %v2892
        %v2925 = vpack.c.bf16 %v2897, %v2893
        %v2926 = vpack.c.bf16 %v2898, %v2894
        %v2927 = vpack.c.bf16 %v2903, %v2899
        %v2928 = vpack.c.bf16 %v2904, %v2900
        %v2929 = vpack.c.bf16 %v2905, %v2901
        %v2930 = vpack.c.bf16 %v2906, %v2902
        %v2931 = vpack.c.bf16 %v2911, %v2907
        %v2932 = vpack.c.bf16 %v2912, %v2908
        %v2933 = vpack.c.bf16 %v2913, %v2909
        %v2934 = vpack.c.bf16 %v2914, %v2910
        %v2935 = vpack.c.bf16 %v2919, %v2915
        %v2936 = vpack.c.bf16 %v2920, %v2916
        %v2937 = vpack.c.bf16 %v2921, %v2917
        %v2938 = vpack.c.bf16 %v2922, %v2918
        %v2939 = vld [vmem:[#allocation7] sm:$0xf]
        %v2940 = vld [vmem:[#allocation7 + $0x4] sm:$0xf]
        %v2941 = vld [vmem:[#allocation7 + $0x8] sm:$0xf]
        %v2942 = vld [vmem:[#allocation7 + $0xc] sm:$0xf]
        %v2943 = vld [vmem:[#allocation7 + $0x10] sm:$0xf]
        %v2944 = vld [vmem:[#allocation7 + $0x14] sm:$0xf]
        %v2945 = vld [vmem:[#allocation7 + $0x18] sm:$0xf]
        %v2946 = vld [vmem:[#allocation7 + $0x1c] sm:$0xf]
        %v2947 = vld [vmem:[#allocation7 + $0x20] sm:$0xf]
        %v2948 = vld [vmem:[#allocation7 + $0x24] sm:$0xf]
        %v2949 = vld [vmem:[#allocation7 + $0x28] sm:$0xf]
        %v2950 = vld [vmem:[#allocation7 + $0x2c] sm:$0xf]
        %v2951 = vld [vmem:[#allocation7 + $0x30] sm:$0xf]
        %v2952 = vld [vmem:[#allocation7 + $0x34] sm:$0xf]
        %v2953 = vld [vmem:[#allocation7 + $0x38] sm:$0xf]
        %v2954 = vld [vmem:[#allocation7 + $0x3c] sm:$0xf]
        %v2955 = vld [vmem:[#allocation7 + $0x40] sm:$0xf]
        %v2956 = vld [vmem:[#allocation7 + $0x44] sm:$0xf]
        %v2957 = vld [vmem:[#allocation7 + $0x48] sm:$0xf]
        %v2958 = vld [vmem:[#allocation7 + $0x4c] sm:$0xf]
        %v2959 = vld [vmem:[#allocation7 + $0x50] sm:$0xf]
        %v2960 = vld [vmem:[#allocation7 + $0x54] sm:$0xf]
        %v2961 = vld [vmem:[#allocation7 + $0x58] sm:$0xf]
        %v2962 = vld [vmem:[#allocation7 + $0x5c] sm:$0xf]
        %v2963 = vld [vmem:[#allocation7 + $0x60] sm:$0xf]
        %v2964 = vld [vmem:[#allocation7 + $0x64] sm:$0xf]
        %v2965 = vld [vmem:[#allocation7 + $0x68] sm:$0xf]
        %v2966 = vld [vmem:[#allocation7 + $0x6c] sm:$0xf]
        %v2967 = vld [vmem:[#allocation7 + $0x70] sm:$0xf]
        %v2968 = vld [vmem:[#allocation7 + $0x74] sm:$0xf]
        %v2969 = vld [vmem:[#allocation7 + $0x78] sm:$0xf]
        %v2970 = vld [vmem:[#allocation7 + $0x7c] sm:$0xf]
        %v2971 = vld [vmem:[#allocation7 + $0x80] sm:$0xf]
        %v2972 = vld [vmem:[#allocation7 + $0x84] sm:$0xf]
        %v2973 = vld [vmem:[#allocation7 + $0x88] sm:$0xf]
        %v2974 = vld [vmem:[#allocation7 + $0x8c] sm:$0xf]
        %v2975 = vld [vmem:[#allocation7 + $0x90] sm:$0xf]
        %v2976 = vld [vmem:[#allocation7 + $0x94] sm:$0xf]
        %v2977 = vld [vmem:[#allocation7 + $0x98] sm:$0xf]
        %v2978 = vld [vmem:[#allocation7 + $0x9c] sm:$0xf]
        %v2979 = vld [vmem:[#allocation7 + $0xa0] sm:$0xf]
        %v2980 = vld [vmem:[#allocation7 + $0xa4] sm:$0xf]
        %v2981 = vld [vmem:[#allocation7 + $0xa8] sm:$0xf]
        %v2982 = vld [vmem:[#allocation7 + $0xac] sm:$0xf]
        %v2983 = vld [vmem:[#allocation7 + $0xb0] sm:$0xf]
        %v2984 = vld [vmem:[#allocation7 + $0xb4] sm:$0xf]
        %v2985 = vld [vmem:[#allocation7 + $0xb8] sm:$0xf]
        %v2986 = vld [vmem:[#allocation7 + $0xbc] sm:$0xf]
        %v2987 = vld [vmem:[#allocation7 + $0xc0] sm:$0xf]
        %v2988 = vld [vmem:[#allocation7 + $0xc4] sm:$0xf]
        %v2989 = vld [vmem:[#allocation7 + $0xc8] sm:$0xf]
        %v2990 = vld [vmem:[#allocation7 + $0xcc] sm:$0xf]
        %v2991 = vld [vmem:[#allocation7 + $0xd0] sm:$0xf]
        %v2992 = vld [vmem:[#allocation7 + $0xd4] sm:$0xf]
        %v2993 = vld [vmem:[#allocation7 + $0xd8] sm:$0xf]
        %v2994 = vld [vmem:[#allocation7 + $0xdc] sm:$0xf]
        %v2995 = vld [vmem:[#allocation7 + $0xe0] sm:$0xf]
        %v2996 = vld [vmem:[#allocation7 + $0xe4] sm:$0xf]
        %v2997 = vld [vmem:[#allocation7 + $0xe8] sm:$0xf]
        %v2998 = vld [vmem:[#allocation7 + $0xec] sm:$0xf]
        %v2999 = vld [vmem:[#allocation7 + $0xf0] sm:$0xf]
        %v3000 = vld [vmem:[#allocation7 + $0xf4] sm:$0xf]
        %v3001 = vld [vmem:[#allocation7 + $0xf8] sm:$0xf]
        %v3002 = vld [vmem:[#allocation7 + $0xfc] sm:$0xf]
        %v3003 = vld [vmem:[#allocation7 + $0x100] sm:$0x1]
        %v3004 = vunpack.c.l.bf16 %v3003
        %v3005 = vlaneseq
        %v3006 = vshrl.u32 %v3005, 7
        %v3007 = vsub.s32 0, %v3006
        %v3008 = vrot.slane %v3004, %v3007
        %v3073 = vunpack.c.l.b16 %v2939
        %v3074 = vunpack.c.l.b16 %v2940
        %v3075 = vunpack.c.l.b16 %v2941
        %v3076 = vunpack.c.l.b16 %v2942
        %v3077 = vunpack.c.l.b16 %v2943
        %v3078 = vunpack.c.l.b16 %v2944
        %v3079 = vunpack.c.l.b16 %v2945
        %v3080 = vunpack.c.l.b16 %v2946
        %v3081 = vunpack.c.l.b16 %v2947
        %v3082 = vunpack.c.l.b16 %v2948
        %v3083 = vunpack.c.l.b16 %v2949
        %v3084 = vunpack.c.l.b16 %v2950
        %v3085 = vunpack.c.l.b16 %v2951
        %v3086 = vunpack.c.l.b16 %v2952
        %v3087 = vunpack.c.l.b16 %v2953
        %v3088 = vunpack.c.l.b16 %v2954
        %v3089 = vunpack.c.l.b16 %v2955
        %v3090 = vunpack.c.l.b16 %v2956
        %v3091 = vunpack.c.l.b16 %v2957
        %v3092 = vunpack.c.l.b16 %v2958
        %v3093 = vunpack.c.l.b16 %v2959
        %v3094 = vunpack.c.l.b16 %v2960
        %v3095 = vunpack.c.l.b16 %v2961
        %v3096 = vunpack.c.l.b16 %v2962
        %v3097 = vunpack.c.l.b16 %v2963
        %v3098 = vunpack.c.l.b16 %v2964
        %v3099 = vunpack.c.l.b16 %v2965
        %v3100 = vunpack.c.l.b16 %v2966
        %v3101 = vunpack.c.l.b16 %v2967
        %v3102 = vunpack.c.l.b16 %v2968
        %v3103 = vunpack.c.l.b16 %v2969
        %v3104 = vunpack.c.l.b16 %v2970
        %v3105 = vunpack.c.l.b16 %v2971
        %v3106 = vunpack.c.l.b16 %v2972
        %v3107 = vunpack.c.l.b16 %v2973
        %v3108 = vunpack.c.l.b16 %v2974
        %v3109 = vunpack.c.l.b16 %v2975
        %v3110 = vunpack.c.l.b16 %v2976
        %v3111 = vunpack.c.l.b16 %v2977
        %v3112 = vunpack.c.l.b16 %v2978
        %v3113 = vunpack.c.l.b16 %v2979
        %v3114 = vunpack.c.l.b16 %v2980
        %v3115 = vunpack.c.l.b16 %v2981
        %v3116 = vunpack.c.l.b16 %v2982
        %v3117 = vunpack.c.l.b16 %v2983
        %v3118 = vunpack.c.l.b16 %v2984
        %v3119 = vunpack.c.l.b16 %v2985
        %v3120 = vunpack.c.l.b16 %v2986
        %v3121 = vunpack.c.l.b16 %v2987
        %v3122 = vunpack.c.l.b16 %v2988
        %v3123 = vunpack.c.l.b16 %v2989
        %v3124 = vunpack.c.l.b16 %v2990
        %v3125 = vunpack.c.l.b16 %v2991
        %v3126 = vunpack.c.l.b16 %v2992
        %v3127 = vunpack.c.l.b16 %v2993
        %v3128 = vunpack.c.l.b16 %v2994
        %v3129 = vunpack.c.l.b16 %v2995
        %v3130 = vunpack.c.l.b16 %v2996
        %v3131 = vunpack.c.l.b16 %v2997
        %v3132 = vunpack.c.l.b16 %v2998
        %v3133 = vunpack.c.l.b16 %v2999
        %v3134 = vunpack.c.l.b16 %v3000
        %v3135 = vunpack.c.l.b16 %v3001
        %v3136 = vunpack.c.l.b16 %v3002
        %v3137 = vpack.c.b16 %v3074, %v3073
        %v3138 = vpack.c.b16 %v3076, %v3075
        %v3139 = vpack.c.b16 %v3078, %v3077
        %v3140 = vpack.c.b16 %v3080, %v3079
        %v3141 = vpack.c.b16 %v3082, %v3081
        %v3142 = vpack.c.b16 %v3084, %v3083
        %v3143 = vpack.c.b16 %v3086, %v3085
        %v3144 = vpack.c.b16 %v3088, %v3087
        %v3145 = vpack.c.b16 %v3090, %v3089
        %v3146 = vpack.c.b16 %v3092, %v3091
        %v3147 = vpack.c.b16 %v3094, %v3093
        %v3148 = vpack.c.b16 %v3096, %v3095
        %v3149 = vpack.c.b16 %v3098, %v3097
        %v3150 = vpack.c.b16 %v3100, %v3099
        %v3151 = vpack.c.b16 %v3102, %v3101
        %v3152 = vpack.c.b16 %v3104, %v3103
        %v3153 = vpack.c.b16 %v3106, %v3105
        %v3154 = vpack.c.b16 %v3108, %v3107
        %v3155 = vpack.c.b16 %v3110, %v3109
        %v3156 = vpack.c.b16 %v3112, %v3111
        %v3157 = vpack.c.b16 %v3114, %v3113
        %v3158 = vpack.c.b16 %v3116, %v3115
        %v3159 = vpack.c.b16 %v3118, %v3117
        %v3160 = vpack.c.b16 %v3120, %v3119
        %v3161 = vpack.c.b16 %v3122, %v3121
        %v3162 = vpack.c.b16 %v3124, %v3123
        %v3163 = vpack.c.b16 %v3126, %v3125
        %v3164 = vpack.c.b16 %v3128, %v3127
        %v3165 = vpack.c.b16 %v3130, %v3129
        %v3166 = vpack.c.b16 %v3132, %v3131
        %v3167 = vpack.c.b16 %v3134, %v3133
        %v3168 = vpack.c.b16 %v3136, %v3135
        %3201 = vmatprep.subr.bf16.mxu0 0
        %3202 = vmatpush1.bf16.msra.mxu0 %v3137
        %3203 = vmatprep.subr.bf16.mxu0 0
        %3204 = vmatpush1.bf16.msra.mxu0 %v3138
        %3205 = vmatprep.subr.bf16.mxu0 0
        %3206 = vmatpush1.bf16.msra.mxu0 %v3139
        %3207 = vmatprep.subr.bf16.mxu0 0
        %3208 = vmatpush1.bf16.msra.mxu0 %v3140
        %3209 = vmatprep.subr.bf16.mxu0 0
        %3210 = vmatpush1.bf16.msra.mxu0 %v3141
        %3211 = vmatprep.subr.bf16.mxu0 0
        %3212 = vmatpush1.bf16.msra.mxu0 %v3142
        %3213 = vmatprep.subr.bf16.mxu0 0
        %3214 = vmatpush1.bf16.msra.mxu0 %v3143
        %3215 = vmatprep.subr.bf16.mxu0 0
        %3216 = vmatpush1.bf16.msra.mxu0 %v3144
        %3217 = vmatprep.subr.bf16.mxu0 0
        %3218 = vmatpush1.bf16.msra.mxu0 %v3145
        %3219 = vmatprep.subr.bf16.mxu0 0
        %3220 = vmatpush1.bf16.msra.mxu0 %v3146
        %3221 = vmatprep.subr.bf16.mxu0 0
        %3222 = vmatpush1.bf16.msra.mxu0 %v3147
        %3223 = vmatprep.subr.bf16.mxu0 0
        %3224 = vmatpush1.bf16.msra.mxu0 %v3148
        %3225 = vmatprep.subr.bf16.mxu0 0
        %3226 = vmatpush1.bf16.msra.mxu0 %v3149
        %3227 = vmatprep.subr.bf16.mxu0 0
        %3228 = vmatpush1.bf16.msra.mxu0 %v3150
        %3229 = vmatprep.subr.bf16.mxu0 0
        %3230 = vmatpush1.bf16.msra.mxu0 %v3151
        %3231 = vmatprep.subr.bf16.mxu0 0
        %3232 = vmatpush1.bf16.msra.mxu0 %v3152
        %3233 = vmatprep.mubr.bf16.mxu0 %v2924
        %3234 = vmatmul.mubr.bf16.gmra.mrb[0].mxu0 %v2923
        %v3235 = vpop.f32.mrb[0].mxu0
        %v3236 = vadd.f32 %v3008, %v3235
        %v3237 = vpop.f32.mrb[0].mxu0
        %v3238 = vpop.f32.mrb[0].mxu0
        %v3239 = vadd.f32 %v3008, %v3238
        %v3240 = vpop.f32.mrb[0].mxu0
        %3241 = vmatprep.mubr.bf16.mxu0 %v2928
        %3242 = vmatmul.mubr.bf16.gmra.mrb[0].mxu0 %v2927
        %v3243 = vpop.f32.mrb[0].mxu0
        %v3244 = vadd.f32 %v3008, %v3243
        %v3245 = vpop.f32.mrb[0].mxu0
        %v3246 = vpop.f32.mrb[0].mxu0
        %v3247 = vadd.f32 %v3008, %v3246
        %v3248 = vpop.f32.mrb[0].mxu0
        %3249 = vmatprep.mubr.bf16.mxu0 %v2932
        %3250 = vmatmul.mubr.bf16.gmra.mrb[0].mxu0 %v2931
        %v3251 = vpop.f32.mrb[0].mxu0
        %v3252 = vadd.f32 %v3008, %v3251
        %v3253 = vpop.f32.mrb[0].mxu0
        %v3254 = vpop.f32.mrb[0].mxu0
        %v3255 = vadd.f32 %v3008, %v3254
        %v3256 = vpop.f32.mrb[0].mxu0
        %3257 = vmatprep.mubr.bf16.mxu0 %v2936
        %3258 = vmatmul.mubr.bf16.gmra.mrb[0].mxu0 %v2935
        %v3259 = vpop.f32.mrb[0].mxu0
        %v3260 = vadd.f32 %v3008, %v3259
        %v3261 = vpop.f32.mrb[0].mxu0
        %v3262 = vpop.f32.mrb[0].mxu0
        %v3263 = vadd.f32 %v3008, %v3262
        %v3264 = vpop.f32.mrb[0].mxu0
        %3265 = vdwg.mxu0
        %3266 = vmatprep.subr.bf16.mxu0 0
        %3267 = vmatpush1.bf16.msra.mxu0 %v3153
        %3268 = vmatprep.subr.bf16.mxu0 0
        %3269 = vmatpush1.bf16.msra.mxu0 %v3154
        %3270 = vmatprep.subr.bf16.mxu0 0
        %3271 = vmatpush1.bf16.msra.mxu0 %v3155
        %3272 = vmatprep.subr.bf16.mxu0 0
        %3273 = vmatpush1.bf16.msra.mxu0 %v3156
        %3274 = vmatprep.subr.bf16.mxu0 0
        %3275 = vmatpush1.bf16.msra.mxu0 %v3157
        %3276 = vmatprep.subr.bf16.mxu0 0
        %3277 = vmatpush1.bf16.msra.mxu0 %v3158
        %3278 = vmatprep.subr.bf16.mxu0 0
        %3279 = vmatpush1.bf16.msra.mxu0 %v3159
        %3280 = vmatprep.subr.bf16.mxu0 0
        %3281 = vmatpush1.bf16.msra.mxu0 %v3160
        %3282 = vmatprep.subr.bf16.mxu0 0
        %3283 = vmatpush1.bf16.msra.mxu0 %v3161
        %3284 = vmatprep.subr.bf16.mxu0 0
        %3285 = vmatpush1.bf16.msra.mxu0 %v3162
        %3286 = vmatprep.subr.bf16.mxu0 0
        %3287 = vmatpush1.bf16.msra.mxu0 %v3163
        %3288 = vmatprep.subr.bf16.mxu0 0
        %3289 = vmatpush1.bf16.msra.mxu0 %v3164
        %3290 = vmatprep.subr.bf16.mxu0 0
        %3291 = vmatpush1.bf16.msra.mxu0 %v3165
        %3292 = vmatprep.subr.bf16.mxu0 0
        %3293 = vmatpush1.bf16.msra.mxu0 %v3166
        %3294 = vmatprep.subr.bf16.mxu0 0
        %3295 = vmatpush1.bf16.msra.mxu0 %v3167
        %3296 = vmatprep.subr.bf16.mxu0 0
        %3297 = vmatpush1.bf16.msra.mxu0 %v3168
        %3298 = vmatprep.mubr.bf16.mxu0 %v2926
        %3299 = vmatmul.mubr.bf16.gmra.mrb[0].mxu0 %v2925
        %v3300 = vpop.f32.mrb[0].mxu0
        %v3301 = vadd.f32 %v3236, %v3300
        %v3302 = vpop.f32.mrb[0].mxu0
        %v3303 = vpop.f32.mrb[0].mxu0
        %v3304 = vadd.f32 %v3239, %v3303
        %v3305 = vpop.f32.mrb[0].mxu0
        %3306 = vmatprep.mubr.bf16.mxu0 %v2930
        %3307 = vmatmul.mubr.bf16.gmra.mrb[0].mxu0 %v2929
        %v3308 = vpop.f32.mrb[0].mxu0
        %v3309 = vadd.f32 %v3244, %v3308
        %v3310 = vpop.f32.mrb[0].mxu0
        %v3311 = vpop.f32.mrb[0].mxu0
        %v3312 = vadd.f32 %v3247, %v3311
        %v3313 = vpop.f32.mrb[0].mxu0
        %3314 = vmatprep.mubr.bf16.mxu0 %v2934
        %3315 = vmatmul.mubr.bf16.gmra.mrb[0].mxu0 %v2933
        %v3316 = vpop.f32.mrb[0].mxu0
        %v3317 = vadd.f32 %v3252, %v3316
        %v3318 = vpop.f32.mrb[0].mxu0
        %v3319 = vpop.f32.mrb[0].mxu0
        %v3320 = vadd.f32 %v3255, %v3319
        %v3321 = vpop.f32.mrb[0].mxu0
        %3322 = vmatprep.mubr.bf16.mxu0 %v2938
        %3323 = vmatmul.mubr.bf16.gmra.mrb[0].mxu0 %v2937
        %v3324 = vpop.f32.mrb[0].mxu0
        %v3325 = vadd.f32 %v3260, %v3324
        %v3326 = vpop.f32.mrb[0].mxu0
        %v3327 = vpop.f32.mrb[0].mxu0
        %v3328 = vadd.f32 %v3263, %v3327
        %v3329 = vpop.f32.mrb[0].mxu0
        %3330 = vdwg.mxu0
        %v3331 = vlaneseq
        %v3332 = vand.u32 %v3331, 127
        %vm3333 = vcmp.lt.s32.totalorder %v3332, 4
        %v3334 = vsel %vm3333, %v3301, -1e+30
        %v3335 = vsel %vm3333, %v3304, -1e+30
        %v3336 = vsel %vm3333, %v3309, -1e+30
        %v3337 = vsel %vm3333, %v3312, -1e+30
        %v3338 = vsel %vm3333, %v3317, -1e+30
        %v3339 = vsel %vm3333, %v3320, -1e+30
        %v3340 = vsel %vm3333, %v3325, -1e+30
        %v3341 = vsel %vm3333, %v3328, -1e+30
        %3342 = vmax.xlane.f32.xlu0 %v3334
        %v3343 = vpop.xlane.xlu0 %3342
        %3344 = vmax.xlane.f32.xlu0 %v3335
        %v3345 = vpop.xlane.xlu0 %3344
        %3346 = vmax.xlane.f32.xlu0 %v3336
        %v3347 = vpop.xlane.xlu0 %3346
        %3348 = vmax.xlane.f32.xlu0 %v3337
        %v3349 = vpop.xlane.xlu0 %3348
        %3350 = vmax.xlane.f32.xlu0 %v3338
        %v3351 = vpop.xlane.xlu0 %3350
        %3352 = vmax.xlane.f32.xlu0 %v3339
        %v3353 = vpop.xlane.xlu0 %3352
        %3354 = vmax.xlane.f32.xlu0 %v3340
        %v3355 = vpop.xlane.xlu0 %3354
        %3356 = vmax.xlane.f32.xlu0 %v3341
        %v3357 = vpop.xlane.xlu0 %3356
        %v3358 = vsub.f32 %v3334, %v3343
        %v3359 = vsub.f32 %v3335, %v3345
        %v3360 = vsub.f32 %v3336, %v3347
        %v3361 = vsub.f32 %v3337, %v3349
        %v3362 = vsub.f32 %v3338, %v3351
        %v3363 = vsub.f32 %v3339, %v3353
        %v3364 = vsub.f32 %v3340, %v3355
        %v3365 = vsub.f32 %v3341, %v3357
        %v3366 = vmul.f32 %v3358, 1.442695
        %v3367 = vpow.pop %v3366
        %v3368 = vmul.f32 %v3359, 1.442695
        %v3369 = vpow.pop %v3368
        %v3370 = vmul.f32 %v3360, 1.442695
        %v3371 = vpow.pop %v3370
        %v3372 = vmul.f32 %v3361, 1.442695
        %v3373 = vpow.pop %v3372
        %v3374 = vmul.f32 %v3362, 1.442695
        %v3375 = vpow.pop %v3374
        %v3376 = vmul.f32 %v3363, 1.442695
        %v3377 = vpow.pop %v3376
        %v3378 = vmul.f32 %v3364, 1.442695
        %v3379 = vpow.pop %v3378
        %v3380 = vmul.f32 %v3365, 1.442695
        %v3381 = vpow.pop %v3380
        %3382 = vadd.xlane.f32.xlu0 %v3367
        %v3383 = vpop.xlane.xlu0 %3382
        %3384 = vadd.xlane.f32.xlu0 %v3369
        %v3385 = vpop.xlane.xlu0 %3384
        %3386 = vadd.xlane.f32.xlu0 %v3371
        %v3387 = vpop.xlane.xlu0 %3386
        %3388 = vadd.xlane.f32.xlu0 %v3373
        %v3389 = vpop.xlane.xlu0 %3388
        %3390 = vadd.xlane.f32.xlu0 %v3375
        %v3391 = vpop.xlane.xlu0 %3390
        %3392 = vadd.xlane.f32.xlu0 %v3377
        %v3393 = vpop.xlane.xlu0 %3392
        %3394 = vadd.xlane.f32.xlu0 %v3379
        %v3395 = vpop.xlane.xlu0 %3394
        %3396 = vadd.xlane.f32.xlu0 %v3381
        %v3397 = vpop.xlane.xlu0 %3396
        %v3398 = vrcp.pop %v3383
        %v3399 = vrcp.pop %v3385
        %v3400 = vrcp.pop %v3387
        %v3401 = vrcp.pop %v3389
        %v3402 = vrcp.pop %v3391
        %v3403 = vrcp.pop %v3393
        %v3404 = vrcp.pop %v3395
        %v3405 = vrcp.pop %v3397
        %v3406 = vmul.f32 %v3367, %v3398
        %v3407 = vmul.f32 %v3369, %v3399
        %v3408 = vmul.f32 %v3371, %v3400
        %v3409 = vmul.f32 %v3373, %v3401
        %v3410 = vmul.f32 %v3375, %v3402
        %v3411 = vmul.f32 %v3377, %v3403
        %v3412 = vmul.f32 %v3379, %v3404
        %v3413 = vmul.f32 %v3381, %v3405
        %3414 = vst [vmem:[%s235] sm:$0xff] %v3406
        %3415 = vst [vmem:[%s235 + $0x8] sm:$0xff] %v3407
        %3416 = vst [vmem:[%s235 + $0x10] sm:$0xff] %v3408
        %3417 = vst [vmem:[%s235 + $0x18] sm:$0xff] %v3409
        %3418 = vst [vmem:[%s235 + $0x20] sm:$0xff] %v3410
        %3419 = vst [vmem:[%s235 + $0x28] sm:$0xff] %v3411
        %3420 = vst [vmem:[%s235 + $0x30] sm:$0xff] %v3412
        %3421 = vst [vmem:[%s235 + $0x38] sm:$0xff] %v3413
        %s3422 = sand.u32 %s117, 1
        %s3423 = scalar_lea.sflag [#allocation4], %s3422
        %s3424 = sand.u32 %s117, 1
        %s3425 = smul.addr %s3424, 64
        %s3426 = scalar_lea.vmem [#allocation8], %s3425
        // Predicated region
        $region49: #{tpu_custom_call.1} parent=35 // pred_check
          %p3427 = pneg %p127
        $region50: #{tpu_custom_call.1} parent=35 // pred_check_branch
          %3429 = sbr.rel (%p3427) target = $region52
        $region51: #{tpu_custom_call.1} parent=35 // pred_region
          %s3430 = smul.u32 8, %s20
          %s3432 = ssub.s32 1024, 1024
          %3433 = vsyncadd %s3423, %s3432
          %s3434 = smul.addr %s3430, 128
          %s3435 = scalar_lea.hbm %s4, %s3434
          %s3436 = sshll.u32 %s3426, 4
          %s3437 = int_to_ptr.vmem [resolvable:$true] %s3436
          %3442 = dma.vmem_to_hbm [thread:$0]  %s3437, 1024, %s3435, %s3423, 128, 128, 8
        $region52: #{tpu_custom_call.1} parent=35 // pred_fallthru
          _
      $region36: #{tpu_custom_call.1} parent=5 // pred_fallthru
        _
      %p3443 = scmp.le.s32.totalorder 2, %s15
      // Predicated region
      $region53: #{tpu_custom_call.1} parent=5 // pred_check
        %p3444 = pneg %p3443
      $region54: #{tpu_custom_call.1} parent=5 // pred_check_branch
        %3446 = sbr.rel (%p3444) target = $region56
      $region55: #{tpu_custom_call.1} parent=5 // pred_region
        %s3447 = ssub.s32 %s15, 2
        // Predicated region
        $region57: #{tpu_custom_call.1} parent=55 // pred_check
          %p3448 = pneg %p133
        $region58: #{tpu_custom_call.1} parent=55 // pred_check_branch
          %3450 = sbr.rel (%p3448) target = $region60
        $region59: #{tpu_custom_call.1} parent=55 // pred_region
          %s3451 = sand.u32 %s118, 1
          %s3452 = scalar_lea.sflag [#allocation4], %s3451
          %s3453 = sand.u32 %s118, 1
          %s3454 = smul.addr %s3453, 64
          %s3455 = scalar_lea.vmem [#allocation8], %s3454
          %3456 = dma.done %s3452, 1024
        $region60: #{tpu_custom_call.1} parent=55 // pred_fallthru
          _
      $region56: #{tpu_custom_call.1} parent=5 // pred_fallthru
        _
    $region6: #{tpu_custom_call.1} parent=1 // loop_footer
      %s19 = sadd.s32 1, %s15
    $region7: #{tpu_custom_call.1} parent=1 // loop_footer_branch
      %14 = sbr.rel target = $region3
    $region8: #{tpu_custom_call.1} parent=1 // loop_exit
      _
    %3457 = vsyncpa [#allocation3], 1
    %s3458 = scalar_lea.sflag [#allocation3], 1
    %3459 = vsyncpa %s3458, 1
    %3460 = vsyncpa [#allocation6], 1
    %3461 = vsyncpa [#allocation4], 1
    %s3462 = scalar_lea.sflag [#allocation4], 1
    %3463 = vsyncpa %s3462, 1

</llo_original>
